<compile_context>
chip_gen: v5e
topology: v5e:2x2
jax: 0.10.0
libtpu: 0.0.40
codegen_flags: <defaults>
</compile_context>

<pallas_src>
import functools
import math

import jax
import jax.numpy as jnp
from jax.experimental import pallas as pl
from jax.experimental.pallas import tpu as pltpu

LN_EPS = 1e-5


def _gelu(x):
    # TODO(synk): PyTorch F.gelu defaults to the exact erf form; tanh approximation is used since
    # erf is not guaranteed to lower in Mosaic (~1e-3-level deviation expected).
    return jax.nn.gelu(x, approximate=True)


def _layernorm(x, gamma, beta):
    mu = jnp.mean(x, axis=-1, keepdims=True)
    var = jnp.mean((x - mu) ** 2, axis=-1, keepdims=True)
    return (x - mu) * jax.lax.rsqrt(var + LN_EPS) * gamma + beta


# ----------------------------------------------------------------------------
# Fused kernel: all post-norm TransformerEncoderLayers (grid axis) + head.
# ----------------------------------------------------------------------------
def fused_recommender_kernel(
        x0_hbm,
        wqkv_ref, bqkv_ref, wo_ref, bo_ref, ln1g_ref, ln1b_ref,
        w1_ref, b1_ref, w2_ref, b2_ref, ln2g_ref, ln2b_ref,
        user_ref, ulng_ref, ulnb_ref, vlng_ref, vlnb_ref,
        wf1u_ref, wf1v_ref, bf1_ref, wf2_ref, bf2_ref, wf3_ref, bf3_ref,
        out_ref, x_scr, x0_sem, *, B, S, num_heads):
    l = pl.program_id(0)
    D = x_scr.shape[-1]
    hd = D // num_heads

    @pl.when(l == 0)
    def _():
        # x0 lives in HBM (memory_space=pl.ANY); DMA it once into the resident activation scratch.
        cp = pltpu.make_async_copy(x0_hbm, x_scr, x0_sem)
        cp.start()
        cp.wait()

    x = x_scr[...]                                  # (B*S, D) f32, resident across layers
    xb = x.astype(jnp.bfloat16)

    # --- multi-head self-attention: fused QKV in one bf16 MXU matmul ---
    # (1/sqrt(hd) is pre-folded into the q columns of wqkv/bqkv at init.)
    qkv = jnp.dot(xb, wqkv_ref[...], preferred_element_type=jnp.float32) + bqkv_ref[...]
    qb = qkv[:, :D].astype(jnp.bfloat16)
    kb = qkv[:, D:2 * D].astype(jnp.bfloat16)
    vb = qkv[:, 2 * D:].astype(jnp.bfloat16)

    # TODO(synk): batched 'bqhd,bkhd->bhqk' form once multi-batch-dim dot_general lowering is confirmed.
    head_outs = []
    for h in range(num_heads):                      # static, small
        sl = slice(h * hd, (h + 1) * hd)
        qh = qb[:, sl].reshape(B, S, hd)
        kh = kb[:, sl].reshape(B, S, hd)
        vh = vb[:, sl].reshape(B, S, hd)
        s = jnp.einsum('bqd,bkd->bqk', qh, kh,
                       preferred_element_type=jnp.float32)     # (B, S, S) f32
        m = jnp.max(s, axis=-1, keepdims=True)                 # softmax in f32
        p = jnp.exp(s - m)
        attn = p * pl.reciprocal(jnp.sum(p, axis=-1, keepdims=True), approx=True)  # EUP divide
        oh = jnp.einsum('bqk,bkd->bqd', attn.astype(jnp.bfloat16), vh,
                        preferred_element_type=jnp.float32)    # (B, S, hd) f32
        head_outs.append(oh.reshape(B * S, hd))
    head_cat = jnp.concatenate(head_outs, axis=-1)             # (B*S, D) f32
    attn_out = jnp.dot(head_cat.astype(jnp.bfloat16), wo_ref[...],
                       preferred_element_type=jnp.float32) + bo_ref[...]

    # --- post-norm residual + FFN (LayerNorm/GELU in f32, matmul operands bf16) ---
    y = _layernorm(x + attn_out, ln1g_ref[...], ln1b_ref[...])            # norm1
    # TODO(synk): at production D, chunk the 4*D hidden axis so full w1/w2 never sit in VMEM (v7x).
    h1 = _gelu(jnp.dot(y.astype(jnp.bfloat16), w1_ref[...],
                       preferred_element_type=jnp.float32) + b1_ref[...])
    h2 = jnp.dot(h1.astype(jnp.bfloat16), w2_ref[...],
                 preferred_element_type=jnp.float32) + b2_ref[...]
    x_new = _layernorm(y + h2, ln2g_ref[...], ln2b_ref[...])              # norm2
    x_scr[...] = x_new

    # --- head (final encoder LN, mean pool, user LN, fusion MLP) on the last grid step ---
    @pl.when(l == pl.num_programs(0) - 1)
    def _():
        user_ln = _layernorm(user_ref[...], ulng_ref[...], ulnb_ref[...])   # (B, D)
        enc_ln = _layernorm(x_new, vlng_ref[...], vlnb_ref[...])            # (B*S, D)
        pooled = jnp.mean(enc_ln.reshape(B, S, D), axis=1)                  # (B, D)
        # fusion Linear(2D -> D) with the concat folded into two bf16 matmuls
        hf = _gelu(jnp.dot(user_ln.astype(jnp.bfloat16), wf1u_ref[...],
                           preferred_element_type=jnp.float32)
                   + jnp.dot(pooled.astype(jnp.bfloat16), wf1v_ref[...],
                             preferred_element_type=jnp.float32)
                   + bf1_ref[...])
        hf = _gelu(jnp.dot(hf.astype(jnp.bfloat16), wf2_ref[...],
                           preferred_element_type=jnp.float32) + bf2_ref[...])
        # wf3/bf3 are lane-padded to 128 output columns (column 0 is the real score) -> unmasked store.
        out_ref[...] = jnp.dot(hf.astype(jnp.bfloat16), wf3_ref[...],
                               preferred_element_type=jnp.float32) + bf3_ref[...]


# ----------------------------------------------------------------------------
# Wrapper
# ----------------------------------------------------------------------------
_LAYER_PARAM_NAMES = ("wqkv", "bqkv", "wo", "bo", "ln1g", "ln1b",
                      "w1", "b1", "w2", "b2", "ln2g", "ln2b")


def _layer_spec(arr):
    # stacked (L, ...) weight: stream layer l's block; leading dim squeezed out of the kernel view.
    n_rest = arr.ndim - 1
    return pl.BlockSpec((None,) + arr.shape[1:],
                        lambda l, _n=n_rest: (l,) + (0,) * _n)


def _const_spec(arr):
    # layer-independent input: same (full) block every grid step -> stays resident in VMEM.
    n = arr.ndim
    return pl.BlockSpec(arr.shape, lambda l, _n=n: (0,) * _n)


def _vmem_limit_bytes(x0, layer_args, head_args, out_elems):
    # 2x (double-buffered) streamed per-layer weights + resident head consts + activation scratch
    # + output block, with 4x headroom for in-kernel temporaries (qkv, scores, h1) / compiler scratch.
    per_layer = sum(int(a.size // a.shape[0]) * a.dtype.itemsize for a in layer_args)
    resident = sum(int(a.size) * a.dtype.itemsize for a in head_args) + out_elems * 4
    scratch = int(x0.size) * 4
    est = 4 * (2 * per_layer + resident + scratch)
    # floor at the v6e default scoped limit; cap below v7x's 64 MiB physical VMEM.
    return int(min(max(est, 32 * 1024 * 1024), 60 * 1024 * 1024))


def video_recommender_forward(params, user_ids, video_history, num_heads):
    B, S = video_history.shape
    D = params["user_table"].shape[1]
    num_layers = params["wqkv"].shape[0]

    # embedding lookups (glue; plain JAX gathers)
    user_e = params["user_table"][user_ids]                      # (B, D) f32
    vid_e = params["video_table"][video_history]                 # (B, S, D)
    pos_e = params["pos_table"][:S][None, :, :]                  # (1, S, D)
    x0 = (vid_e + pos_e).astype(jnp.float32).reshape(B * S, D)   # dropout -> identity (inference)

    layer_args = tuple(params[n] for n in _LAYER_PARAM_NAMES)
    head_args = (user_e, params["ulng"], params["ulnb"], params["vlng"], params["vlnb"],
                 params["wf1u"], params["wf1v"], params["bf1"],
                 params["wf2"], params["bf2"], params["wf3"], params["bf3"])
    args = (x0,) + layer_args + head_args

    in_specs = ([pl.BlockSpec(memory_space=pl.ANY)]              # x0 stays in HBM; DMA'd at l==0
                + [_layer_spec(a) for a in layer_args]
                + [_const_spec(a) for a in head_args])

    out = pl.pallas_call(
        functools.partial(fused_recommender_kernel, B=B, S=S, num_heads=num_heads),
        out_shape=jax.ShapeDtypeStruct((B, 128), jnp.float32),   # lane-padded score slab
        grid=(num_layers,),
        in_specs=in_specs,
        out_specs=pl.BlockSpec((B, 128), lambda l: (0, 0)),      # written only on last step
        scratch_shapes=[pltpu.VMEM((B * S, D), jnp.float32),     # resident activation
                        pltpu.SemaphoreType.DMA(())],            # x0 HBM->VMEM DMA
        compiler_params=pltpu.CompilerParams(
            dimension_semantics=("arbitrary",),                  # layer axis is sequential
            vmem_limit_bytes=_vmem_limit_bytes(x0, layer_args, head_args, B * 128)),
    )(*args)
    return out[:, 0]


# ----------------------------------------------------------------------------
# Deterministic parameter initialization (synthetic; no checkpoint load).
# Per-layer weights stacked on a leading L axis, stored (in, out); matmul weights in bf16.
# ----------------------------------------------------------------------------
def init_params(key, num_videos, num_users, D, num_heads, num_layers, max_seq):
    kit = iter(jax.random.split(key, 32))

    def nrm(shape, scale=0.02):
        return (scale * jax.random.normal(next(kit), shape)).astype(jnp.float32)

    def ones(shape):
        return jnp.ones(shape, jnp.float32)

    def zeros(shape):
        return jnp.zeros(shape, jnp.float32)

    def bf16(a):
        return a.astype(jnp.bfloat16)

    L = num_layers
    hd = D // num_heads
    scale = 1.0 / math.sqrt(hd)

    # fused QKV with 1/sqrt(hd) folded into the q columns (and q bias, here zero) at init.
    wqkv = nrm((L, D, 3 * D))
    wqkv = wqkv.at[:, :, :D].multiply(scale)
    bqkv = zeros((L, 1, 3 * D))

    wf1 = nrm((2 * D, D))                                   # fusion Linear(2D -> D), stored (in, out)
    wf3 = jnp.zeros((D // 2, 128), jnp.float32).at[:, 0:1].set(nrm((D // 2, 1)))  # lane-padded head

    return dict(
        user_table=nrm((num_users, D), 1.0),
        video_table=nrm((num_videos, D), 1.0),
        pos_table=nrm((max_seq, D), 1.0),
        # transformer layers (stacked): fused QKV, output proj, norms, FFN
        wqkv=bf16(wqkv), bqkv=bqkv,
        wo=bf16(nrm((L, D, D))), bo=zeros((L, 1, D)),
        ln1g=ones((L, 1, D)), ln1b=zeros((L, 1, D)),
        w1=bf16(nrm((L, D, 4 * D))), b1=zeros((L, 1, 4 * D)),
        w2=bf16(nrm((L, 4 * D, D))), b2=zeros((L, 1, D)),
        ln2g=ones((L, 1, D)), ln2b=zeros((L, 1, D)),
        # head
        ulng=ones((1, D)), ulnb=zeros((1, D)),              # UserEncoder LayerNorm
        vlng=ones((1, D)), vlnb=zeros((1, D)),              # VideoTransformerEncoder final LayerNorm
        wf1u=bf16(wf1[:D, :]), wf1v=bf16(wf1[D:, :]), bf1=zeros((1, D)),
        wf2=bf16(nrm((D, D // 2))), bf2=zeros((1, D // 2)),
        wf3=bf16(wf3), bf3=zeros((1, 128)),
        # NOTE: self.video_embeddings parameter is unused in forward() (only get_recommendations).
    )


if __name__ == "__main__":
    B, S = 2, 8
    D, NUM_HEADS, NUM_LAYERS = 32, 4, 2
    NUM_VIDEOS, NUM_USERS, MAX_SEQ = 64, 16, 100

    key = jax.random.PRNGKey(0)
    k_par, k_user, k_hist = jax.random.split(key, 3)

    params = init_params(k_par, NUM_VIDEOS, NUM_USERS, D, NUM_HEADS, NUM_LAYERS, MAX_SEQ)
    user_ids = jax.random.randint(k_user, (B,), 0, NUM_USERS)
    video_history = jax.random.randint(k_hist, (B, S), 0, NUM_VIDEOS)

    preference = video_recommender_forward(params, user_ids, video_history, NUM_HEADS)
    preference = jax.block_until_ready(preference)
    assert preference.shape == (B,) and preference.dtype == jnp.float32
    print("KERNEL_OK")
</pallas_src>

<mosaic_0001>
module attributes {stable_mosaic.version = 11 : i64} {
  func.func @fused_recommender_kernel(%arg0: i32, %arg1: memref<16x32xf32, #tpu.memory_space<any>>, %arg2: memref<1x32x96xbf16, #tpu.memory_space<vmem>>, %arg3: memref<1x1x96xf32, #tpu.memory_space<vmem>>, %arg4: memref<1x32x32xbf16, #tpu.memory_space<vmem>>, %arg5: memref<1x1x32xf32, #tpu.memory_space<vmem>>, %arg6: memref<1x1x32xf32, #tpu.memory_space<vmem>>, %arg7: memref<1x1x32xf32, #tpu.memory_space<vmem>>, %arg8: memref<1x32x128xbf16, #tpu.memory_space<vmem>>, %arg9: memref<1x1x128xf32, #tpu.memory_space<vmem>>, %arg10: memref<1x128x32xbf16, #tpu.memory_space<vmem>>, %arg11: memref<1x1x32xf32, #tpu.memory_space<vmem>>, %arg12: memref<1x1x32xf32, #tpu.memory_space<vmem>>, %arg13: memref<1x1x32xf32, #tpu.memory_space<vmem>>, %arg14: memref<2x32xf32, #tpu.memory_space<vmem>>, %arg15: memref<1x32xf32, #tpu.memory_space<vmem>>, %arg16: memref<1x32xf32, #tpu.memory_space<vmem>>, %arg17: memref<1x32xf32, #tpu.memory_space<vmem>>, %arg18: memref<1x32xf32, #tpu.memory_space<vmem>>, %arg19: memref<32x32xbf16, #tpu.memory_space<vmem>>, %arg20: memref<32x32xbf16, #tpu.memory_space<vmem>>, %arg21: memref<1x32xf32, #tpu.memory_space<vmem>>, %arg22: memref<32x16xbf16, #tpu.memory_space<vmem>>, %arg23: memref<1x16xf32, #tpu.memory_space<vmem>>, %arg24: memref<16x128xbf16, #tpu.memory_space<vmem>>, %arg25: memref<1x128xf32, #tpu.memory_space<vmem>>, %arg26: memref<2x128xf32, #tpu.memory_space<vmem>>, %arg27: memref<16x32xf32, #tpu.memory_space<vmem>>, %arg28: memref<!tpu.dma_semaphore, #tpu.memory_space<semaphore_mem>>) attributes {dimension_semantics = [#tpu.dimension_semantics<arbitrary>], iteration_bounds = array<i64: 2>, scalar_prefetch = 0 : i64, scratch_operands = 2 : i64, tpu.core_type = #tpu.core_type<tc>, window_params = [{}, {transform_indices = @transform_1, window_bounds = array<i64: 1, 32, 96>}, {transform_indices = @transform_2, window_bounds = array<i64: 1, 1, 96>}, {transform_indices = @transform_3, window_bounds = array<i64: 1, 32, 32>}, {transform_indices = @transform_4, window_bounds = array<i64: 1, 1, 32>}, {transform_indices = @transform_5, window_bounds = array<i64: 1, 1, 32>}, {transform_indices = @transform_6, window_bounds = array<i64: 1, 1, 32>}, {transform_indices = @transform_7, window_bounds = array<i64: 1, 32, 128>}, {transform_indices = @transform_8, window_bounds = array<i64: 1, 1, 128>}, {transform_indices = @transform_9, window_bounds = array<i64: 1, 128, 32>}, {transform_indices = @transform_10, window_bounds = array<i64: 1, 1, 32>}, {transform_indices = @transform_11, window_bounds = array<i64: 1, 1, 32>}, {transform_indices = @transform_12, window_bounds = array<i64: 1, 1, 32>}, {pipeline_mode = #tpu.pipeline_mode<synchronous>, transform_indices = @transform_13, window_bounds = array<i64: 2, 32>}, {pipeline_mode = #tpu.pipeline_mode<synchronous>, transform_indices = @transform_14, window_bounds = array<i64: 1, 32>}, {pipeline_mode = #tpu.pipeline_mode<synchronous>, transform_indices = @transform_15, window_bounds = array<i64: 1, 32>}, {pipeline_mode = #tpu.pipeline_mode<synchronous>, transform_indices = @transform_16, window_bounds = array<i64: 1, 32>}, {pipeline_mode = #tpu.pipeline_mode<synchronous>, transform_indices = @transform_17, window_bounds = array<i64: 1, 32>}, {pipeline_mode = #tpu.pipeline_mode<synchronous>, transform_indices = @transform_18, window_bounds = array<i64: 32, 32>}, {pipeline_mode = #tpu.pipeline_mode<synchronous>, transform_indices = @transform_19, window_bounds = array<i64: 32, 32>}, {pipeline_mode = #tpu.pipeline_mode<synchronous>, transform_indices = @transform_20, window_bounds = array<i64: 1, 32>}, {pipeline_mode = #tpu.pipeline_mode<synchronous>, transform_indices = @transform_21, window_bounds = array<i64: 32, 16>}, {pipeline_mode = #tpu.pipeline_mode<synchronous>, transform_indices = @transform_22, window_bounds = array<i64: 1, 16>}, {pipeline_mode = #tpu.pipeline_mode<synchronous>, transform_indices = @transform_23, window_bounds = array<i64: 16, 128>}, {pipeline_mode = #tpu.pipeline_mode<synchronous>, transform_indices = @transform_24, window_bounds = array<i64: 1, 128>}, {pipeline_mode = #tpu.pipeline_mode<synchronous>, transform_indices = @transform_25, window_bounds = array<i64: 2, 128>}]} {
    %c0_i32 = arith.constant 0 : i32
    %0 = arith.cmpi eq, %arg0, %c0_i32 : i32
    %1 = arith.extui %0 : i1 to i32
    %c0_i32_0 = arith.constant 0 : i32
    %2 = arith.cmpi ne, %1, %c0_i32_0 : i32
    scf.if %2 {
      tpu.enqueue_dma source(%arg1 : memref<16x32xf32, #tpu.memory_space<any>>) target(%arg27 : memref<16x32xf32, #tpu.memory_space<vmem>>) target_semaphore(%arg28 : memref<!tpu.dma_semaphore, #tpu.memory_space<semaphore_mem>>)
      tpu.wait_dma2 semaphore(%arg28 : memref<!tpu.dma_semaphore, #tpu.memory_space<semaphore_mem>>) src(%arg1 : memref<16x32xf32, #tpu.memory_space<any>>) dst(%arg27 : memref<16x32xf32, #tpu.memory_space<vmem>>)
    } else {
    }
    %c0 = arith.constant 0 : index
    %c0_1 = arith.constant 0 : index
    %3 = vector.load %arg27[%c0, %c0_1] : memref<16x32xf32, #tpu.memory_space<vmem>>, vector<16x32xf32>
    %4 = arith.truncf %3 : vector<16x32xf32> to vector<16x32xbf16>
    %c0_2 = arith.constant 0 : index
    %c0_3 = arith.constant 0 : index
    %c0_4 = arith.constant 0 : index
    %5 = vector.load %arg2[%c0_2, %c0_3, %c0_4] : memref<1x32x96xbf16, #tpu.memory_space<vmem>>, vector<1x32x96xbf16>
    %6 = vector.shape_cast %5 : vector<1x32x96xbf16> to vector<32x96xbf16>
    %cst = arith.constant dense<0.000000e+00> : vector<16x96xf32>
    %7 = tpu.matmul %4, %6, %cst {dimension_numbers = #tpu.dot_dimension_numbers<[1], [0], [0], [1], [0, 0, 1, 1], [], []>} : vector<16x32xbf16>, vector<32x96xbf16>, vector<16x96xf32> -> vector<16x96xf32>
    %c0_5 = arith.constant 0 : index
    %c0_6 = arith.constant 0 : index
    %c0_7 = arith.constant 0 : index
    %8 = vector.load %arg3[%c0_5, %c0_6, %c0_7] : memref<1x1x96xf32, #tpu.memory_space<vmem>>, vector<1x1x96xf32>
    %9 = vector.shape_cast %8 : vector<1x1x96xf32> to vector<1x96xf32>
    %10 = vector.broadcast %9 : vector<1x96xf32> to vector<16x96xf32>
    %11 = arith.addf %7, %10 : vector<16x96xf32>
    %12 = vector.extract_strided_slice %11 {offsets = [0, 0], sizes = [16, 32], strides = [1, 1]} : vector<16x96xf32> to vector<16x32xf32>
    %13 = arith.truncf %12 : vector<16x32xf32> to vector<16x32xbf16>
    %14 = vector.extract_strided_slice %11 {offsets = [0, 32], sizes = [16, 32], strides = [1, 1]} : vector<16x96xf32> to vector<16x32xf32>
    %15 = arith.truncf %14 : vector<16x32xf32> to vector<16x32xbf16>
    %16 = vector.extract_strided_slice %11 {offsets = [0, 64], sizes = [16, 32], strides = [1, 1]} : vector<16x96xf32> to vector<16x32xf32>
    %17 = arith.truncf %16 : vector<16x32xf32> to vector<16x32xbf16>
    %18 = vector.extract_strided_slice %13 {offsets = [0, 0], sizes = [16, 8], strides = [1, 1]} : vector<16x32xbf16> to vector<16x8xbf16>
    %19 = vector.shape_cast %18 : vector<16x8xbf16> to vector<2x8x8xbf16>
    %20 = vector.extract_strided_slice %15 {offsets = [0, 0], sizes = [16, 8], strides = [1, 1]} : vector<16x32xbf16> to vector<16x8xbf16>
    %21 = vector.shape_cast %20 : vector<16x8xbf16> to vector<2x8x8xbf16>
    %22 = vector.extract_strided_slice %17 {offsets = [0, 0], sizes = [16, 8], strides = [1, 1]} : vector<16x32xbf16> to vector<16x8xbf16>
    %23 = vector.shape_cast %22 : vector<16x8xbf16> to vector<2x8x8xbf16>
    "tpu.trace_start"() <{level = 10 : i32, message = "bqd,bkd->bqk"}> : () -> ()
    %cst_8 = arith.constant dense<0.000000e+00> : vector<2x8x8xf32>
    %24 = tpu.matmul %19, %21, %cst_8 {dimension_numbers = #tpu.dot_dimension_numbers<[2], [2], [1], [1], [0, 0, 0, 1, 1, 1], [0], [0]>} : vector<2x8x8xbf16>, vector<2x8x8xbf16>, vector<2x8x8xf32> -> vector<2x8x8xf32>
    "tpu.trace_stop"() : () -> ()
    %cst_9 = arith.constant dense<0xFF800000> : vector<2x8xf32>
    %25 = vector.multi_reduction <maximumf>, %24, %cst_9 [2] : vector<2x8x8xf32> to vector<2x8xf32>
    %26 = vector.shape_cast %25 : vector<2x8xf32> to vector<2x8x1xf32>
    %27 = vector.broadcast %26 : vector<2x8x1xf32> to vector<2x8x8xf32>
    %28 = arith.subf %24, %27 : vector<2x8x8xf32>
    %29 = math.exp %28 : vector<2x8x8xf32>
    %cst_10 = arith.constant dense<0.000000e+00> : vector<2x8xf32>
    %30 = vector.multi_reduction <add>, %29, %cst_10 [2] : vector<2x8x8xf32> to vector<2x8xf32>
    %31 = vector.shape_cast %30 : vector<2x8xf32> to vector<2x8x1xf32>
    %32 = tpu.reciprocal %31 {approx = true} : vector<2x8x1xf32> -> vector<2x8x1xf32>
    %33 = vector.broadcast %32 : vector<2x8x1xf32> to vector<2x8x8xf32>
    %34 = arith.mulf %29, %33 : vector<2x8x8xf32>
    %35 = arith.truncf %34 : vector<2x8x8xf32> to vector<2x8x8xbf16>
    "tpu.trace_start"() <{level = 10 : i32, message = "bqk,bkd->bqd"}> : () -> ()
    %cst_11 = arith.constant dense<0.000000e+00> : vector<2x8x8xf32>
    %36 = tpu.matmul %35, %23, %cst_11 {dimension_numbers = #tpu.dot_dimension_numbers<[2], [1], [1], [2], [0, 0, 0, 1, 1, 2], [0], [0]>} : vector<2x8x8xbf16>, vector<2x8x8xbf16>, vector<2x8x8xf32> -> vector<2x8x8xf32>
    "tpu.trace_stop"() : () -> ()
    %37 = vector.shape_cast %36 : vector<2x8x8xf32> to vector<16x8xf32>
    %38 = vector.extract_strided_slice %13 {offsets = [0, 8], sizes = [16, 8], strides = [1, 1]} : vector<16x32xbf16> to vector<16x8xbf16>
    %39 = vector.shape_cast %38 : vector<16x8xbf16> to vector<2x8x8xbf16>
    %40 = vector.extract_strided_slice %15 {offsets = [0, 8], sizes = [16, 8], strides = [1, 1]} : vector<16x32xbf16> to vector<16x8xbf16>
    %41 = vector.shape_cast %40 : vector<16x8xbf16> to vector<2x8x8xbf16>
    %42 = vector.extract_strided_slice %17 {offsets = [0, 8], sizes = [16, 8], strides = [1, 1]} : vector<16x32xbf16> to vector<16x8xbf16>
    %43 = vector.shape_cast %42 : vector<16x8xbf16> to vector<2x8x8xbf16>
    "tpu.trace_start"() <{level = 10 : i32, message = "bqd,bkd->bqk"}> : () -> ()
    %cst_12 = arith.constant dense<0.000000e+00> : vector<2x8x8xf32>
    %44 = tpu.matmul %39, %41, %cst_12 {dimension_numbers = #tpu.dot_dimension_numbers<[2], [2], [1], [1], [0, 0, 0, 1, 1, 1], [0], [0]>} : vector<2x8x8xbf16>, vector<2x8x8xbf16>, vector<2x8x8xf32> -> vector<2x8x8xf32>
    "tpu.trace_stop"() : () -> ()
    %cst_13 = arith.constant dense<0xFF800000> : vector<2x8xf32>
    %45 = vector.multi_reduction <maximumf>, %44, %cst_13 [2] : vector<2x8x8xf32> to vector<2x8xf32>
    %46 = vector.shape_cast %45 : vector<2x8xf32> to vector<2x8x1xf32>
    %47 = vector.broadcast %46 : vector<2x8x1xf32> to vector<2x8x8xf32>
    %48 = arith.subf %44, %47 : vector<2x8x8xf32>
    %49 = math.exp %48 : vector<2x8x8xf32>
    %cst_14 = arith.constant dense<0.000000e+00> : vector<2x8xf32>
    %50 = vector.multi_reduction <add>, %49, %cst_14 [2] : vector<2x8x8xf32> to vector<2x8xf32>
    %51 = vector.shape_cast %50 : vector<2x8xf32> to vector<2x8x1xf32>
    %52 = tpu.reciprocal %51 {approx = true} : vector<2x8x1xf32> -> vector<2x8x1xf32>
    %53 = vector.broadcast %52 : vector<2x8x1xf32> to vector<2x8x8xf32>
    %54 = arith.mulf %49, %53 : vector<2x8x8xf32>
    %55 = arith.truncf %54 : vector<2x8x8xf32> to vector<2x8x8xbf16>
    "tpu.trace_start"() <{level = 10 : i32, message = "bqk,bkd->bqd"}> : () -> ()
    %cst_15 = arith.constant dense<0.000000e+00> : vector<2x8x8xf32>
    %56 = tpu.matmul %55, %43, %cst_15 {dimension_numbers = #tpu.dot_dimension_numbers<[2], [1], [1], [2], [0, 0, 0, 1, 1, 2], [0], [0]>} : vector<2x8x8xbf16>, vector<2x8x8xbf16>, vector<2x8x8xf32> -> vector<2x8x8xf32>
    "tpu.trace_stop"() : () -> ()
    %57 = vector.shape_cast %56 : vector<2x8x8xf32> to vector<16x8xf32>
    %58 = vector.extract_strided_slice %13 {offsets = [0, 16], sizes = [16, 8], strides = [1, 1]} : vector<16x32xbf16> to vector<16x8xbf16>
    %59 = vector.shape_cast %58 : vector<16x8xbf16> to vector<2x8x8xbf16>
    %60 = vector.extract_strided_slice %15 {offsets = [0, 16], sizes = [16, 8], strides = [1, 1]} : vector<16x32xbf16> to vector<16x8xbf16>
    %61 = vector.shape_cast %60 : vector<16x8xbf16> to vector<2x8x8xbf16>
    %62 = vector.extract_strided_slice %17 {offsets = [0, 16], sizes = [16, 8], strides = [1, 1]} : vector<16x32xbf16> to vector<16x8xbf16>
    %63 = vector.shape_cast %62 : vector<16x8xbf16> to vector<2x8x8xbf16>
    "tpu.trace_start"() <{level = 10 : i32, message = "bqd,bkd->bqk"}> : () -> ()
    %cst_16 = arith.constant dense<0.000000e+00> : vector<2x8x8xf32>
    %64 = tpu.matmul %59, %61, %cst_16 {dimension_numbers = #tpu.dot_dimension_numbers<[2], [2], [1], [1], [0, 0, 0, 1, 1, 1], [0], [0]>} : vector<2x8x8xbf16>, vector<2x8x8xbf16>, vector<2x8x8xf32> -> vector<2x8x8xf32>
    "tpu.trace_stop"() : () -> ()
    %cst_17 = arith.constant dense<0xFF800000> : vector<2x8xf32>
    %65 = vector.multi_reduction <maximumf>, %64, %cst_17 [2] : vector<2x8x8xf32> to vector<2x8xf32>
    %66 = vector.shape_cast %65 : vector<2x8xf32> to vector<2x8x1xf32>
    %67 = vector.broadcast %66 : vector<2x8x1xf32> to vector<2x8x8xf32>
    %68 = arith.subf %64, %67 : vector<2x8x8xf32>
    %69 = math.exp %68 : vector<2x8x8xf32>
    %cst_18 = arith.constant dense<0.000000e+00> : vector<2x8xf32>
    %70 = vector.multi_reduction <add>, %69, %cst_18 [2] : vector<2x8x8xf32> to vector<2x8xf32>
    %71 = vector.shape_cast %70 : vector<2x8xf32> to vector<2x8x1xf32>
    %72 = tpu.reciprocal %71 {approx = true} : vector<2x8x1xf32> -> vector<2x8x1xf32>
    %73 = vector.broadcast %72 : vector<2x8x1xf32> to vector<2x8x8xf32>
    %74 = arith.mulf %69, %73 : vector<2x8x8xf32>
    %75 = arith.truncf %74 : vector<2x8x8xf32> to vector<2x8x8xbf16>
    "tpu.trace_start"() <{level = 10 : i32, message = "bqk,bkd->bqd"}> : () -> ()
    %cst_19 = arith.constant dense<0.000000e+00> : vector<2x8x8xf32>
    %76 = tpu.matmul %75, %63, %cst_19 {dimension_numbers = #tpu.dot_dimension_numbers<[2], [1], [1], [2], [0, 0, 0, 1, 1, 2], [0], [0]>} : vector<2x8x8xbf16>, vector<2x8x8xbf16>, vector<2x8x8xf32> -> vector<2x8x8xf32>
    "tpu.trace_stop"() : () -> ()
    %77 = vector.shape_cast %76 : vector<2x8x8xf32> to vector<16x8xf32>
    %78 = vector.extract_strided_slice %13 {offsets = [0, 24], sizes = [16, 8], strides = [1, 1]} : vector<16x32xbf16> to vector<16x8xbf16>
    %79 = vector.shape_cast %78 : vector<16x8xbf16> to vector<2x8x8xbf16>
    %80 = vector.extract_strided_slice %15 {offsets = [0, 24], sizes = [16, 8], strides = [1, 1]} : vector<16x32xbf16> to vector<16x8xbf16>
    %81 = vector.shape_cast %80 : vector<16x8xbf16> to vector<2x8x8xbf16>
    %82 = vector.extract_strided_slice %17 {offsets = [0, 24], sizes = [16, 8], strides = [1, 1]} : vector<16x32xbf16> to vector<16x8xbf16>
    %83 = vector.shape_cast %82 : vector<16x8xbf16> to vector<2x8x8xbf16>
    "tpu.trace_start"() <{level = 10 : i32, message = "bqd,bkd->bqk"}> : () -> ()
    %cst_20 = arith.constant dense<0.000000e+00> : vector<2x8x8xf32>
    %84 = tpu.matmul %79, %81, %cst_20 {dimension_numbers = #tpu.dot_dimension_numbers<[2], [2], [1], [1], [0, 0, 0, 1, 1, 1], [0], [0]>} : vector<2x8x8xbf16>, vector<2x8x8xbf16>, vector<2x8x8xf32> -> vector<2x8x8xf32>
    "tpu.trace_stop"() : () -> ()
    %cst_21 = arith.constant dense<0xFF800000> : vector<2x8xf32>
    %85 = vector.multi_reduction <maximumf>, %84, %cst_21 [2] : vector<2x8x8xf32> to vector<2x8xf32>
    %86 = vector.shape_cast %85 : vector<2x8xf32> to vector<2x8x1xf32>
    %87 = vector.broadcast %86 : vector<2x8x1xf32> to vector<2x8x8xf32>
    %88 = arith.subf %84, %87 : vector<2x8x8xf32>
    %89 = math.exp %88 : vector<2x8x8xf32>
    %cst_22 = arith.constant dense<0.000000e+00> : vector<2x8xf32>
    %90 = vector.multi_reduction <add>, %89, %cst_22 [2] : vector<2x8x8xf32> to vector<2x8xf32>
    %91 = vector.shape_cast %90 : vector<2x8xf32> to vector<2x8x1xf32>
    %92 = tpu.reciprocal %91 {approx = true} : vector<2x8x1xf32> -> vector<2x8x1xf32>
    %93 = vector.broadcast %92 : vector<2x8x1xf32> to vector<2x8x8xf32>
    %94 = arith.mulf %89, %93 : vector<2x8x8xf32>
    %95 = arith.truncf %94 : vector<2x8x8xf32> to vector<2x8x8xbf16>
    "tpu.trace_start"() <{level = 10 : i32, message = "bqk,bkd->bqd"}> : () -> ()
    %cst_23 = arith.constant dense<0.000000e+00> : vector<2x8x8xf32>
    %96 = tpu.matmul %95, %83, %cst_23 {dimension_numbers = #tpu.dot_dimension_numbers<[2], [1], [1], [2], [0, 0, 0, 1, 1, 2], [0], [0]>} : vector<2x8x8xbf16>, vector<2x8x8xbf16>, vector<2x8x8xf32> -> vector<2x8x8xf32>
    "tpu.trace_stop"() : () -> ()
    %97 = vector.shape_cast %96 : vector<2x8x8xf32> to vector<16x8xf32>
    %98 = tpu.concatenate %37, %57, %77, %97 in 1 : vector<16x8xf32>, vector<16x8xf32>, vector<16x8xf32>, vector<16x8xf32> -> vector<16x32xf32>
    %99 = arith.truncf %98 : vector<16x32xf32> to vector<16x32xbf16>
    %c0_24 = arith.constant 0 : index
    %c0_25 = arith.constant 0 : index
    %c0_26 = arith.constant 0 : index
    %100 = vector.load %arg4[%c0_24, %c0_25, %c0_26] : memref<1x32x32xbf16, #tpu.memory_space<vmem>>, vector<1x32x32xbf16>
    %101 = vector.shape_cast %100 : vector<1x32x32xbf16> to vector<32x32xbf16>
    %cst_27 = arith.constant dense<0.000000e+00> : vector<16x32xf32>
    %102 = tpu.matmul %99, %101, %cst_27 {dimension_numbers = #tpu.dot_dimension_numbers<[1], [0], [0], [1], [0, 0, 1, 1], [], []>} : vector<16x32xbf16>, vector<32x32xbf16>, vector<16x32xf32> -> vector<16x32xf32>
    %c0_28 = arith.constant 0 : index
    %c0_29 = arith.constant 0 : index
    %c0_30 = arith.constant 0 : index
    %103 = vector.load %arg5[%c0_28, %c0_29, %c0_30] : memref<1x1x32xf32, #tpu.memory_space<vmem>>, vector<1x1x32xf32>
    %104 = vector.shape_cast %103 : vector<1x1x32xf32> to vector<1x32xf32>
    %105 = vector.broadcast %104 : vector<1x32xf32> to vector<16x32xf32>
    %106 = arith.addf %102, %105 : vector<16x32xf32>
    %107 = arith.addf %3, %106 : vector<16x32xf32>
    %c0_31 = arith.constant 0 : index
    %c0_32 = arith.constant 0 : index
    %c0_33 = arith.constant 0 : index
    %108 = vector.load %arg6[%c0_31, %c0_32, %c0_33] : memref<1x1x32xf32, #tpu.memory_space<vmem>>, vector<1x1x32xf32>
    %109 = vector.shape_cast %108 : vector<1x1x32xf32> to vector<1x32xf32>
    %c0_34 = arith.constant 0 : index
    %c0_35 = arith.constant 0 : index
    %c0_36 = arith.constant 0 : index
    %110 = vector.load %arg7[%c0_34, %c0_35, %c0_36] : memref<1x1x32xf32, #tpu.memory_space<vmem>>, vector<1x1x32xf32>
    %111 = vector.shape_cast %110 : vector<1x1x32xf32> to vector<1x32xf32>
    %cst_37 = arith.constant dense<0.000000e+00> : vector<16xf32>
    %112 = vector.multi_reduction <add>, %107, %cst_37 [1] : vector<16x32xf32> to vector<16xf32>
    %113 = vector.shape_cast %112 : vector<16xf32> to vector<16x1xf32>
    %cst_38 = arith.constant 3.200000e+01 : f32
    %114 = vector.broadcast %cst_38 : f32 to vector<16x1xf32>
    %115 = arith.divf %113, %114 : vector<16x1xf32>
    %116 = vector.broadcast %115 : vector<16x1xf32> to vector<16x32xf32>
    %117 = arith.subf %107, %116 : vector<16x32xf32>
    %118 = arith.mulf %117, %117 : vector<16x32xf32>
    %cst_39 = arith.constant dense<0.000000e+00> : vector<16xf32>
    %119 = vector.multi_reduction <add>, %118, %cst_39 [1] : vector<16x32xf32> to vector<16xf32>
    %120 = vector.shape_cast %119 : vector<16xf32> to vector<16x1xf32>
    %cst_40 = arith.constant 3.200000e+01 : f32
    %121 = vector.broadcast %cst_40 : f32 to vector<16x1xf32>
    %122 = arith.divf %120, %121 : vector<16x1xf32>
    %123 = vector.broadcast %115 : vector<16x1xf32> to vector<16x32xf32>
    %124 = arith.subf %107, %123 : vector<16x32xf32>
    %cst_41 = arith.constant 9.99999974E-6 : f32
    %125 = vector.broadcast %cst_41 : f32 to vector<16x1xf32>
    %126 = arith.addf %122, %125 : vector<16x1xf32>
    %127 = math.rsqrt %126 : vector<16x1xf32>
    %128 = vector.broadcast %127 : vector<16x1xf32> to vector<16x32xf32>
    %129 = arith.mulf %124, %128 : vector<16x32xf32>
    %130 = vector.broadcast %109 : vector<1x32xf32> to vector<16x32xf32>
    %131 = arith.mulf %129, %130 : vector<16x32xf32>
    %132 = vector.broadcast %111 : vector<1x32xf32> to vector<16x32xf32>
    %133 = arith.addf %131, %132 : vector<16x32xf32>
    %134 = arith.truncf %133 : vector<16x32xf32> to vector<16x32xbf16>
    %c0_42 = arith.constant 0 : index
    %c0_43 = arith.constant 0 : index
    %c0_44 = arith.constant 0 : index
    %135 = vector.load %arg8[%c0_42, %c0_43, %c0_44] : memref<1x32x128xbf16, #tpu.memory_space<vmem>>, vector<1x32x128xbf16>
    %136 = vector.shape_cast %135 : vector<1x32x128xbf16> to vector<32x128xbf16>
    %cst_45 = arith.constant dense<0.000000e+00> : vector<16x128xf32>
    %137 = tpu.matmul %134, %136, %cst_45 {dimension_numbers = #tpu.dot_dimension_numbers<[1], [0], [0], [1], [0, 0, 1, 1], [], []>} : vector<16x32xbf16>, vector<32x128xbf16>, vector<16x128xf32> -> vector<16x128xf32>
    %c0_46 = arith.constant 0 : index
    %c0_47 = arith.constant 0 : index
    %c0_48 = arith.constant 0 : index
    %138 = vector.load %arg9[%c0_46, %c0_47, %c0_48] : memref<1x1x128xf32, #tpu.memory_space<vmem>>, vector<1x1x128xf32>
    %139 = vector.shape_cast %138 : vector<1x1x128xf32> to vector<1x128xf32>
    %140 = vector.broadcast %139 : vector<1x128xf32> to vector<16x128xf32>
    %141 = arith.addf %137, %140 : vector<16x128xf32>
    %142 = arith.mulf %141, %141 : vector<16x128xf32>
    %143 = arith.mulf %141, %142 : vector<16x128xf32>
    %cst_49 = arith.constant 4.471500e-02 : f32
    %144 = vector.broadcast %cst_49 : f32 to vector<16x128xf32>
    %145 = arith.mulf %144, %143 : vector<16x128xf32>
    %146 = arith.addf %141, %145 : vector<16x128xf32>
    %cst_50 = arith.constant 0.797884583 : f32
    %147 = vector.broadcast %cst_50 : f32 to vector<16x128xf32>
    %148 = arith.mulf %147, %146 : vector<16x128xf32>
    %149 = math.tanh %148 : vector<16x128xf32>
    %cst_51 = arith.constant 1.000000e+00 : f32
    %150 = vector.broadcast %cst_51 : f32 to vector<16x128xf32>
    %151 = arith.addf %150, %149 : vector<16x128xf32>
    %cst_52 = arith.constant 5.000000e-01 : f32
    %152 = vector.broadcast %cst_52 : f32 to vector<16x128xf32>
    %153 = arith.mulf %152, %151 : vector<16x128xf32>
    %154 = arith.mulf %141, %153 : vector<16x128xf32>
    %155 = arith.truncf %154 : vector<16x128xf32> to vector<16x128xbf16>
    %c0_53 = arith.constant 0 : index
    %c0_54 = arith.constant 0 : index
    %c0_55 = arith.constant 0 : index
    %156 = vector.load %arg10[%c0_53, %c0_54, %c0_55] : memref<1x128x32xbf16, #tpu.memory_space<vmem>>, vector<1x128x32xbf16>
    %157 = vector.shape_cast %156 : vector<1x128x32xbf16> to vector<128x32xbf16>
    %cst_56 = arith.constant dense<0.000000e+00> : vector<16x32xf32>
    %158 = tpu.matmul %155, %157, %cst_56 {dimension_numbers = #tpu.dot_dimension_numbers<[1], [0], [0], [1], [0, 0, 1, 1], [], []>} : vector<16x128xbf16>, vector<128x32xbf16>, vector<16x32xf32> -> vector<16x32xf32>
    %c0_57 = arith.constant 0 : index
    %c0_58 = arith.constant 0 : index
    %c0_59 = arith.constant 0 : index
    %159 = vector.load %arg11[%c0_57, %c0_58, %c0_59] : memref<1x1x32xf32, #tpu.memory_space<vmem>>, vector<1x1x32xf32>
    %160 = vector.shape_cast %159 : vector<1x1x32xf32> to vector<1x32xf32>
    %161 = vector.broadcast %160 : vector<1x32xf32> to vector<16x32xf32>
    %162 = arith.addf %158, %161 : vector<16x32xf32>
    %163 = arith.addf %133, %162 : vector<16x32xf32>
    %c0_60 = arith.constant 0 : index
    %c0_61 = arith.constant 0 : index
    %c0_62 = arith.constant 0 : index
    %164 = vector.load %arg12[%c0_60, %c0_61, %c0_62] : memref<1x1x32xf32, #tpu.memory_space<vmem>>, vector<1x1x32xf32>
    %165 = vector.shape_cast %164 : vector<1x1x32xf32> to vector<1x32xf32>
    %c0_63 = arith.constant 0 : index
    %c0_64 = arith.constant 0 : index
    %c0_65 = arith.constant 0 : index
    %166 = vector.load %arg13[%c0_63, %c0_64, %c0_65] : memref<1x1x32xf32, #tpu.memory_space<vmem>>, vector<1x1x32xf32>
    %167 = vector.shape_cast %166 : vector<1x1x32xf32> to vector<1x32xf32>
    %cst_66 = arith.constant dense<0.000000e+00> : vector<16xf32>
    %168 = vector.multi_reduction <add>, %163, %cst_66 [1] : vector<16x32xf32> to vector<16xf32>
    %169 = vector.shape_cast %168 : vector<16xf32> to vector<16x1xf32>
    %cst_67 = arith.constant 3.200000e+01 : f32
    %170 = vector.broadcast %cst_67 : f32 to vector<16x1xf32>
    %171 = arith.divf %169, %170 : vector<16x1xf32>
    %172 = vector.broadcast %171 : vector<16x1xf32> to vector<16x32xf32>
    %173 = arith.subf %163, %172 : vector<16x32xf32>
    %174 = arith.mulf %173, %173 : vector<16x32xf32>
    %cst_68 = arith.constant dense<0.000000e+00> : vector<16xf32>
    %175 = vector.multi_reduction <add>, %174, %cst_68 [1] : vector<16x32xf32> to vector<16xf32>
    %176 = vector.shape_cast %175 : vector<16xf32> to vector<16x1xf32>
    %cst_69 = arith.constant 3.200000e+01 : f32
    %177 = vector.broadcast %cst_69 : f32 to vector<16x1xf32>
    %178 = arith.divf %176, %177 : vector<16x1xf32>
    %179 = vector.broadcast %171 : vector<16x1xf32> to vector<16x32xf32>
    %180 = arith.subf %163, %179 : vector<16x32xf32>
    %cst_70 = arith.constant 9.99999974E-6 : f32
    %181 = vector.broadcast %cst_70 : f32 to vector<16x1xf32>
    %182 = arith.addf %178, %181 : vector<16x1xf32>
    %183 = math.rsqrt %182 : vector<16x1xf32>
    %184 = vector.broadcast %183 : vector<16x1xf32> to vector<16x32xf32>
    %185 = arith.mulf %180, %184 : vector<16x32xf32>
    %186 = vector.broadcast %165 : vector<1x32xf32> to vector<16x32xf32>
    %187 = arith.mulf %185, %186 : vector<16x32xf32>
    %188 = vector.broadcast %167 : vector<1x32xf32> to vector<16x32xf32>
    %189 = arith.addf %187, %188 : vector<16x32xf32>
    %c0_71 = arith.constant 0 : index
    %c0_72 = arith.constant 0 : index
    %190 = vector.load %arg27[%c0_71, %c0_72] : memref<16x32xf32, #tpu.memory_space<vmem>>, vector<16x32xf32>
    tpu.vector_store %arg27[%c0_71, %c0_72], %189 {strides = array<i32>} : memref<16x32xf32, #tpu.memory_space<vmem>>, vector<16x32xf32>,
    %c1_i32 = arith.constant 1 : i32
    %191 = arith.cmpi eq, %arg0, %c1_i32 : i32
    %192 = arith.extui %191 : i1 to i32
    %c0_i32_73 = arith.constant 0 : i32
    %193 = arith.cmpi ne, %192, %c0_i32_73 : i32
    scf.if %193 {
      %c0_74 = arith.constant 0 : index
      %c0_75 = arith.constant 0 : index
      %194 = vector.load %arg14[%c0_74, %c0_75] : memref<2x32xf32, #tpu.memory_space<vmem>>, vector<2x32xf32>
      %c0_76 = arith.constant 0 : index
      %c0_77 = arith.constant 0 : index
      %195 = vector.load %arg15[%c0_76, %c0_77] : memref<1x32xf32, #tpu.memory_space<vmem>>, vector<1x32xf32>
      %c0_78 = arith.constant 0 : index
      %c0_79 = arith.constant 0 : index
      %196 = vector.load %arg16[%c0_78, %c0_79] : memref<1x32xf32, #tpu.memory_space<vmem>>, vector<1x32xf32>
      %cst_80 = arith.constant dense<0.000000e+00> : vector<2xf32>
      %197 = vector.multi_reduction <add>, %194, %cst_80 [1] : vector<2x32xf32> to vector<2xf32>
      %198 = vector.shape_cast %197 : vector<2xf32> to vector<2x1xf32>
      %cst_81 = arith.constant 3.200000e+01 : f32
      %199 = vector.broadcast %cst_81 : f32 to vector<2x1xf32>
      %200 = arith.divf %198, %199 : vector<2x1xf32>
      %201 = vector.broadcast %200 : vector<2x1xf32> to vector<2x32xf32>
      %202 = arith.subf %194, %201 : vector<2x32xf32>
      %203 = arith.mulf %202, %202 : vector<2x32xf32>
      %cst_82 = arith.constant dense<0.000000e+00> : vector<2xf32>
      %204 = vector.multi_reduction <add>, %203, %cst_82 [1] : vector<2x32xf32> to vector<2xf32>
      %205 = vector.shape_cast %204 : vector<2xf32> to vector<2x1xf32>
      %cst_83 = arith.constant 3.200000e+01 : f32
      %206 = vector.broadcast %cst_83 : f32 to vector<2x1xf32>
      %207 = arith.divf %205, %206 : vector<2x1xf32>
      %208 = vector.broadcast %200 : vector<2x1xf32> to vector<2x32xf32>
      %209 = arith.subf %194, %208 : vector<2x32xf32>
      %cst_84 = arith.constant 9.99999974E-6 : f32
      %210 = vector.broadcast %cst_84 : f32 to vector<2x1xf32>
      %211 = arith.addf %207, %210 : vector<2x1xf32>
      %212 = math.rsqrt %211 : vector<2x1xf32>
      %213 = vector.broadcast %212 : vector<2x1xf32> to vector<2x32xf32>
      %214 = arith.mulf %209, %213 : vector<2x32xf32>
      %215 = vector.broadcast %195 : vector<1x32xf32> to vector<2x32xf32>
      %216 = arith.mulf %214, %215 : vector<2x32xf32>
      %217 = vector.broadcast %196 : vector<1x32xf32> to vector<2x32xf32>
      %218 = arith.addf %216, %217 : vector<2x32xf32>
      %c0_85 = arith.constant 0 : index
      %c0_86 = arith.constant 0 : index
      %219 = vector.load %arg17[%c0_85, %c0_86] : memref<1x32xf32, #tpu.memory_space<vmem>>, vector<1x32xf32>
      %c0_87 = arith.constant 0 : index
      %c0_88 = arith.constant 0 : index
      %220 = vector.load %arg18[%c0_87, %c0_88] : memref<1x32xf32, #tpu.memory_space<vmem>>, vector<1x32xf32>
      %cst_89 = arith.constant dense<0.000000e+00> : vector<16xf32>
      %221 = vector.multi_reduction <add>, %189, %cst_89 [1] : vector<16x32xf32> to vector<16xf32>
      %222 = vector.shape_cast %221 : vector<16xf32> to vector<16x1xf32>
      %cst_90 = arith.constant 3.200000e+01 : f32
      %223 = vector.broadcast %cst_90 : f32 to vector<16x1xf32>
      %224 = arith.divf %222, %223 : vector<16x1xf32>
      %225 = vector.broadcast %224 : vector<16x1xf32> to vector<16x32xf32>
      %226 = arith.subf %189, %225 : vector<16x32xf32>
      %227 = arith.mulf %226, %226 : vector<16x32xf32>
      %cst_91 = arith.constant dense<0.000000e+00> : vector<16xf32>
      %228 = vector.multi_reduction <add>, %227, %cst_91 [1] : vector<16x32xf32> to vector<16xf32>
      %229 = vector.shape_cast %228 : vector<16xf32> to vector<16x1xf32>
      %cst_92 = arith.constant 3.200000e+01 : f32
      %230 = vector.broadcast %cst_92 : f32 to vector<16x1xf32>
      %231 = arith.divf %229, %230 : vector<16x1xf32>
      %232 = vector.broadcast %224 : vector<16x1xf32> to vector<16x32xf32>
      %233 = arith.subf %189, %232 : vector<16x32xf32>
      %cst_93 = arith.constant 9.99999974E-6 : f32
      %234 = vector.broadcast %cst_93 : f32 to vector<16x1xf32>
      %235 = arith.addf %231, %234 : vector<16x1xf32>
      %236 = math.rsqrt %235 : vector<16x1xf32>
      %237 = vector.broadcast %236 : vector<16x1xf32> to vector<16x32xf32>
      %238 = arith.mulf %233, %237 : vector<16x32xf32>
      %239 = vector.broadcast %219 : vector<1x32xf32> to vector<16x32xf32>
      %240 = arith.mulf %238, %239 : vector<16x32xf32>
      %241 = vector.broadcast %220 : vector<1x32xf32> to vector<16x32xf32>
      %242 = arith.addf %240, %241 : vector<16x32xf32>
      %243 = vector.shape_cast %242 : vector<16x32xf32> to vector<2x8x32xf32>
      %cst_94 = arith.constant dense<0.000000e+00> : vector<2x32xf32>
      %244 = vector.multi_reduction <add>, %243, %cst_94 [1] : vector<2x8x32xf32> to vector<2x32xf32>
      %cst_95 = arith.constant 8.000000e+00 : f32
      %245 = vector.broadcast %cst_95 : f32 to vector<2x32xf32>
      %246 = arith.divf %244, %245 : vector<2x32xf32>
      %247 = arith.truncf %218 : vector<2x32xf32> to vector<2x32xbf16>
      %c0_96 = arith.constant 0 : index
      %c0_97 = arith.constant 0 : index
      %248 = vector.load %arg19[%c0_96, %c0_97] : memref<32x32xbf16, #tpu.memory_space<vmem>>, vector<32x32xbf16>
      %cst_98 = arith.constant dense<0.000000e+00> : vector<2x32xf32>
      %249 = tpu.matmul %247, %248, %cst_98 {dimension_numbers = #tpu.dot_dimension_numbers<[1], [0], [0], [1], [0, 0, 1, 1], [], []>} : vector<2x32xbf16>, vector<32x32xbf16>, vector<2x32xf32> -> vector<2x32xf32>
      %250 = arith.truncf %246 : vector<2x32xf32> to vector<2x32xbf16>
      %c0_99 = arith.constant 0 : index
      %c0_100 = arith.constant 0 : index
      %251 = vector.load %arg20[%c0_99, %c0_100] : memref<32x32xbf16, #tpu.memory_space<vmem>>, vector<32x32xbf16>
      %cst_101 = arith.constant dense<0.000000e+00> : vector<2x32xf32>
      %252 = tpu.matmul %250, %251, %cst_101 {dimension_numbers = #tpu.dot_dimension_numbers<[1], [0], [0], [1], [0, 0, 1, 1], [], []>} : vector<2x32xbf16>, vector<32x32xbf16>, vector<2x32xf32> -> vector<2x32xf32>
      %253 = arith.addf %249, %252 : vector<2x32xf32>
      %c0_102 = arith.constant 0 : index
      %c0_103 = arith.constant 0 : index
      %254 = vector.load %arg21[%c0_102, %c0_103] : memref<1x32xf32, #tpu.memory_space<vmem>>, vector<1x32xf32>
      %255 = vector.broadcast %254 : vector<1x32xf32> to vector<2x32xf32>
      %256 = arith.addf %253, %255 : vector<2x32xf32>
      %257 = arith.mulf %256, %256 : vector<2x32xf32>
      %258 = arith.mulf %256, %257 : vector<2x32xf32>
      %cst_104 = arith.constant 4.471500e-02 : f32
      %259 = vector.broadcast %cst_104 : f32 to vector<2x32xf32>
      %260 = arith.mulf %259, %258 : vector<2x32xf32>
      %261 = arith.addf %256, %260 : vector<2x32xf32>
      %cst_105 = arith.constant 0.797884583 : f32
      %262 = vector.broadcast %cst_105 : f32 to vector<2x32xf32>
      %263 = arith.mulf %262, %261 : vector<2x32xf32>
      %264 = math.tanh %263 : vector<2x32xf32>
      %cst_106 = arith.constant 1.000000e+00 : f32
      %265 = vector.broadcast %cst_106 : f32 to vector<2x32xf32>
      %266 = arith.addf %265, %264 : vector<2x32xf32>
      %cst_107 = arith.constant 5.000000e-01 : f32
      %267 = vector.broadcast %cst_107 : f32 to vector<2x32xf32>
      %268 = arith.mulf %267, %266 : vector<2x32xf32>
      %269 = arith.mulf %256, %268 : vector<2x32xf32>
      %270 = arith.truncf %269 : vector<2x32xf32> to vector<2x32xbf16>
      %c0_108 = arith.constant 0 : index
      %c0_109 = arith.constant 0 : index
      %271 = vector.load %arg22[%c0_108, %c0_109] : memref<32x16xbf16, #tpu.memory_space<vmem>>, vector<32x16xbf16>
      %cst_110 = arith.constant dense<0.000000e+00> : vector<2x16xf32>
      %272 = tpu.matmul %270, %271, %cst_110 {dimension_numbers = #tpu.dot_dimension_numbers<[1], [0], [0], [1], [0, 0, 1, 1], [], []>} : vector<2x32xbf16>, vector<32x16xbf16>, vector<2x16xf32> -> vector<2x16xf32>
      %c0_111 = arith.constant 0 : index
      %c0_112 = arith.constant 0 : index
      %273 = vector.load %arg23[%c0_111, %c0_112] : memref<1x16xf32, #tpu.memory_space<vmem>>, vector<1x16xf32>
      %274 = vector.broadcast %273 : vector<1x16xf32> to vector<2x16xf32>
      %275 = arith.addf %272, %274 : vector<2x16xf32>
      %276 = arith.mulf %275, %275 : vector<2x16xf32>
      %277 = arith.mulf %275, %276 : vector<2x16xf32>
      %cst_113 = arith.constant 4.471500e-02 : f32
      %278 = vector.broadcast %cst_113 : f32 to vector<2x16xf32>
      %279 = arith.mulf %278, %277 : vector<2x16xf32>
      %280 = arith.addf %275, %279 : vector<2x16xf32>
      %cst_114 = arith.constant 0.797884583 : f32
      %281 = vector.broadcast %cst_114 : f32 to vector<2x16xf32>
      %282 = arith.mulf %281, %280 : vector<2x16xf32>
      %283 = math.tanh %282 : vector<2x16xf32>
      %cst_115 = arith.constant 1.000000e+00 : f32
      %284 = vector.broadcast %cst_115 : f32 to vector<2x16xf32>
      %285 = arith.addf %284, %283 : vector<2x16xf32>
      %cst_116 = arith.constant 5.000000e-01 : f32
      %286 = vector.broadcast %cst_116 : f32 to vector<2x16xf32>
      %287 = arith.mulf %286, %285 : vector<2x16xf32>
      %288 = arith.mulf %275, %287 : vector<2x16xf32>
      %289 = arith.truncf %288 : vector<2x16xf32> to vector<2x16xbf16>
      %c0_117 = arith.constant 0 : index
      %c0_118 = arith.constant 0 : index
      %290 = vector.load %arg24[%c0_117, %c0_118] : memref<16x128xbf16, #tpu.memory_space<vmem>>, vector<16x128xbf16>
      %cst_119 = arith.constant dense<0.000000e+00> : vector<2x128xf32>
      %291 = tpu.matmul %289, %290, %cst_119 {dimension_numbers = #tpu.dot_dimension_numbers<[1], [0], [0], [1], [0, 0, 1, 1], [], []>} : vector<2x16xbf16>, vector<16x128xbf16>, vector<2x128xf32> -> vector<2x128xf32>
      %c0_120 = arith.constant 0 : index
      %c0_121 = arith.constant 0 : index
      %292 = vector.load %arg25[%c0_120, %c0_121] : memref<1x128xf32, #tpu.memory_space<vmem>>, vector<1x128xf32>
      %293 = vector.broadcast %292 : vector<1x128xf32> to vector<2x128xf32>
      %294 = arith.addf %291, %293 : vector<2x128xf32>
      %c0_122 = arith.constant 0 : index
      %c0_123 = arith.constant 0 : index
      %295 = vector.load %arg26[%c0_122, %c0_123] : memref<2x128xf32, #tpu.memory_space<vmem>>, vector<2x128xf32>
      tpu.vector_store %arg26[%c0_122, %c0_123], %294 {strides = array<i32>} : memref<2x128xf32, #tpu.memory_space<vmem>>, vector<2x128xf32>,
    } else {
    }
    return
  }
  func.func @transform_1(%arg0: i32) -> (i32, i32, i32) {
    %c0_i32 = arith.constant 0 : i32
    %c0_i32_0 = arith.constant 0 : i32
    %c0_i32_1 = arith.constant 0 : i32
    return %arg0, %c0_i32, %c0_i32_0 : i32, i32, i32
  }
  func.func @transform_2(%arg0: i32) -> (i32, i32, i32) {
    %c0_i32 = arith.constant 0 : i32
    %c0_i32_0 = arith.constant 0 : i32
    %c0_i32_1 = arith.constant 0 : i32
    return %arg0, %c0_i32, %c0_i32_0 : i32, i32, i32
  }
  func.func @transform_3(%arg0: i32) -> (i32, i32, i32) {
    %c0_i32 = arith.constant 0 : i32
    %c0_i32_0 = arith.constant 0 : i32
    %c0_i32_1 = arith.constant 0 : i32
    return %arg0, %c0_i32, %c0_i32_0 : i32, i32, i32
  }
  func.func @transform_4(%arg0: i32) -> (i32, i32, i32) {
    %c0_i32 = arith.constant 0 : i32
    %c0_i32_0 = arith.constant 0 : i32
    %c0_i32_1 = arith.constant 0 : i32
    return %arg0, %c0_i32, %c0_i32_0 : i32, i32, i32
  }
  func.func @transform_5(%arg0: i32) -> (i32, i32, i32) {
    %c0_i32 = arith.constant 0 : i32
    %c0_i32_0 = arith.constant 0 : i32
    %c0_i32_1 = arith.constant 0 : i32
    return %arg0, %c0_i32, %c0_i32_0 : i32, i32, i32
  }
  func.func @transform_6(%arg0: i32) -> (i32, i32, i32) {
    %c0_i32 = arith.constant 0 : i32
    %c0_i32_0 = arith.constant 0 : i32
    %c0_i32_1 = arith.constant 0 : i32
    return %arg0, %c0_i32, %c0_i32_0 : i32, i32, i32
  }
  func.func @transform_7(%arg0: i32) -> (i32, i32, i32) {
    %c0_i32 = arith.constant 0 : i32
    %c0_i32_0 = arith.constant 0 : i32
    %c0_i32_1 = arith.constant 0 : i32
    return %arg0, %c0_i32, %c0_i32_0 : i32, i32, i32
  }
  func.func @transform_8(%arg0: i32) -> (i32, i32, i32) {
    %c0_i32 = arith.constant 0 : i32
    %c0_i32_0 = arith.constant 0 : i32
    %c0_i32_1 = arith.constant 0 : i32
    return %arg0, %c0_i32, %c0_i32_0 : i32, i32, i32
  }
  func.func @transform_9(%arg0: i32) -> (i32, i32, i32) {
    %c0_i32 = arith.constant 0 : i32
    %c0_i32_0 = arith.constant 0 : i32
    %c0_i32_1 = arith.constant 0 : i32
    return %arg0, %c0_i32, %c0_i32_0 : i32, i32, i32
  }
  func.func @transform_10(%arg0: i32) -> (i32, i32, i32) {
    %c0_i32 = arith.constant 0 : i32
    %c0_i32_0 = arith.constant 0 : i32
    %c0_i32_1 = arith.constant 0 : i32
    return %arg0, %c0_i32, %c0_i32_0 : i32, i32, i32
  }
  func.func @transform_11(%arg0: i32) -> (i32, i32, i32) {
    %c0_i32 = arith.constant 0 : i32
    %c0_i32_0 = arith.constant 0 : i32
    %c0_i32_1 = arith.constant 0 : i32
    return %arg0, %c0_i32, %c0_i32_0 : i32, i32, i32
  }
  func.func @transform_12(%arg0: i32) -> (i32, i32, i32) {
    %c0_i32 = arith.constant 0 : i32
    %c0_i32_0 = arith.constant 0 : i32
    %c0_i32_1 = arith.constant 0 : i32
    return %arg0, %c0_i32, %c0_i32_0 : i32, i32, i32
  }
  func.func @transform_13(%arg0: i32) -> (i32, i32) {
    %c0_i32 = arith.constant 0 : i32
    %c0_i32_0 = arith.constant 0 : i32
    %c0_i32_1 = arith.constant 0 : i32
    return %c0_i32, %c0_i32_0 : i32, i32
  }
  func.func @transform_14(%arg0: i32) -> (i32, i32) {
    %c0_i32 = arith.constant 0 : i32
    %c0_i32_0 = arith.constant 0 : i32
    %c0_i32_1 = arith.constant 0 : i32
    return %c0_i32, %c0_i32_0 : i32, i32
  }
  func.func @transform_15(%arg0: i32) -> (i32, i32) {
    %c0_i32 = arith.constant 0 : i32
    %c0_i32_0 = arith.constant 0 : i32
    %c0_i32_1 = arith.constant 0 : i32
    return %c0_i32, %c0_i32_0 : i32, i32
  }
  func.func @transform_16(%arg0: i32) -> (i32, i32) {
    %c0_i32 = arith.constant 0 : i32
    %c0_i32_0 = arith.constant 0 : i32
    %c0_i32_1 = arith.constant 0 : i32
    return %c0_i32, %c0_i32_0 : i32, i32
  }
  func.func @transform_17(%arg0: i32) -> (i32, i32) {
    %c0_i32 = arith.constant 0 : i32
    %c0_i32_0 = arith.constant 0 : i32
    %c0_i32_1 = arith.constant 0 : i32
    return %c0_i32, %c0_i32_0 : i32, i32
  }
  func.func @transform_18(%arg0: i32) -> (i32, i32) {
    %c0_i32 = arith.constant 0 : i32
    %c0_i32_0 = arith.constant 0 : i32
    %c0_i32_1 = arith.constant 0 : i32
    return %c0_i32, %c0_i32_0 : i32, i32
  }
  func.func @transform_19(%arg0: i32) -> (i32, i32) {
    %c0_i32 = arith.constant 0 : i32
    %c0_i32_0 = arith.constant 0 : i32
    %c0_i32_1 = arith.constant 0 : i32
    return %c0_i32, %c0_i32_0 : i32, i32
  }
  func.func @transform_20(%arg0: i32) -> (i32, i32) {
    %c0_i32 = arith.constant 0 : i32
    %c0_i32_0 = arith.constant 0 : i32
    %c0_i32_1 = arith.constant 0 : i32
    return %c0_i32, %c0_i32_0 : i32, i32
  }
  func.func @transform_21(%arg0: i32) -> (i32, i32) {
    %c0_i32 = arith.constant 0 : i32
    %c0_i32_0 = arith.constant 0 : i32
    %c0_i32_1 = arith.constant 0 : i32
    return %c0_i32, %c0_i32_0 : i32, i32
  }
  func.func @transform_22(%arg0: i32) -> (i32, i32) {
    %c0_i32 = arith.constant 0 : i32
    %c0_i32_0 = arith.constant 0 : i32
    %c0_i32_1 = arith.constant 0 : i32
    return %c0_i32, %c0_i32_0 : i32, i32
  }
  func.func @transform_23(%arg0: i32) -> (i32, i32) {
    %c0_i32 = arith.constant 0 : i32
    %c0_i32_0 = arith.constant 0 : i32
    %c0_i32_1 = arith.constant 0 : i32
    return %c0_i32, %c0_i32_0 : i32, i32
  }
  func.func @transform_24(%arg0: i32) -> (i32, i32) {
    %c0_i32 = arith.constant 0 : i32
    %c0_i32_0 = arith.constant 0 : i32
    %c0_i32_1 = arith.constant 0 : i32
    return %c0_i32, %c0_i32_0 : i32, i32
  }
  func.func @transform_25(%arg0: i32) -> (i32, i32) {
    %c0_i32 = arith.constant 0 : i32
    %c0_i32_0 = arith.constant 0 : i32
    %c0_i32_1 = arith.constant 0 : i32
    return %c0_i32, %c0_i32_0 : i32, i32
  }
}

</mosaic_0001>

<llo_original>
// kernel: tpu_custom_call.1
$region0: #{tpu_custom_call.1}
  #allocation0 [shape = 'u32[]', space=smem, size = 0x4, offset = 0x4, fixed_abs, tag = 'smem constant byte address 0x4 - core index']
  #allocation1 [shape = 'u32[72,128]{1,0:T(1,128)}', space=vmem, size = 0x9000, scoped, tag = 'internal scratch']
  #allocation2 [shape = 'f32[16,32]{1,0:T(8,128)}', space=vmem, size = 0x2000, scoped, tag = 'scratch operand']
  #allocation3 [shape = 's32[1]{0}', space=sflag, size = 0x4, scoped, tag = 'scratch operand']
  #allocation20 [shape = 's32[]', space=sflag, size = 0x4, offset = 0, fixed_abs, tag = 'sflag constant byte address 0x0 - dummy sync flag']
  %s0 = inlined_call_operand.vmem [shape: f32[16,32], index: 0, kind: input, shape index: {}]
  %s1 = inlined_call_operand.vmem [shape: bf16[2,32,96], index: 1, kind: input, shape index: {}]
  %s2 = inlined_call_operand.vmem [shape: f32[2,1,96], index: 2, kind: input, shape index: {}]
  %s3 = inlined_call_operand.vmem [shape: bf16[2,32,32], index: 3, kind: input, shape index: {}]
  %s4 = inlined_call_operand.vmem [shape: f32[2,1,32], index: 4, kind: input, shape index: {}]
  %s5 = inlined_call_operand.vmem [shape: f32[2,1,32], index: 5, kind: input, shape index: {}]
  %s6 = inlined_call_operand.vmem [shape: f32[2,1,32], index: 6, kind: input, shape index: {}]
  %s7 = inlined_call_operand.vmem [shape: bf16[2,32,128], index: 7, kind: input, shape index: {}]
  %s8 = inlined_call_operand.hbm [shape: f32[2,1,128], index: 8, kind: input, shape index: {}]
  %s9 = inlined_call_operand.vmem [shape: bf16[2,128,32], index: 9, kind: input, shape index: {}]
  %s10 = inlined_call_operand.hbm [shape: f32[2,1,32], index: 10, kind: input, shape index: {}]
  %s11 = inlined_call_operand.hbm [shape: f32[2,1,32], index: 11, kind: input, shape index: {}]
  %s12 = inlined_call_operand.hbm [shape: f32[2,1,32], index: 12, kind: input, shape index: {}]
  %s13 = inlined_call_operand.hbm [shape: f32[2,32], index: 13, kind: input, shape index: {}]
  %s14 = inlined_call_operand.hbm [shape: f32[1,32], index: 14, kind: input, shape index: {}]
  %s15 = inlined_call_operand.hbm [shape: f32[1,32], index: 15, kind: input, shape index: {}]
  %s16 = inlined_call_operand.hbm [shape: f32[1,32], index: 16, kind: input, shape index: {}]
  %s17 = inlined_call_operand.hbm [shape: f32[1,32], index: 17, kind: input, shape index: {}]
  %s18 = inlined_call_operand.vmem [shape: bf16[32,32], index: 18, kind: input, shape index: {}]
  %s19 = inlined_call_operand.vmem [shape: bf16[32,32], index: 19, kind: input, shape index: {}]
  %s20 = inlined_call_operand.vmem [shape: f32[1,32], index: 20, kind: input, shape index: {}]
  %s21 = inlined_call_operand.vmem [shape: bf16[32,16], index: 21, kind: input, shape index: {}]
  %s22 = inlined_call_operand.vmem [shape: f32[1,16], index: 22, kind: input, shape index: {}]
  %s23 = inlined_call_operand.vmem [shape: bf16[16,128], index: 23, kind: input, shape index: {}]
  %s24 = inlined_call_operand.vmem [shape: f32[1,128], index: 24, kind: input, shape index: {}]
  %s25 = inlined_call_operand.hbm [shape: f32[2,128], index: 25, kind: output, shape index: {}]
  %s26 = sld [smem:[#allocation0]]
  $region192: #{tpu_custom_call.1} parent=0
    _
  %s28 = ssub.s32 1, %s26
  %s29 = scalar_select 0, %s28, %s26
  $region1: #{tpu_custom_call.1} parent=0
    #allocation4 [shape = 'u8[1024]{0}', space=vmem, size = 0x400, scoped, tag = 'input window, operand 8']
    #allocation5 [shape = 's32[2]{0}', space=sflag, size = 0x8, scoped, tag = 'scoped memory for tpu_custom_call.1']
    #allocation6 [shape = 's32[2]{0}', space=sflag, size = 0x8, scoped, tag = 'scoped memory for tpu_custom_call.1']
    #allocation7 [shape = 'u8[1024]{0}', space=vmem, size = 0x400, scoped, tag = 'input window, operand 10']
    #allocation8 [shape = 's32[2]{0}', space=sflag, size = 0x8, scoped, tag = 'scoped memory for tpu_custom_call.1']
    #allocation9 [shape = 'u8[1024]{0}', space=vmem, size = 0x400, scoped, tag = 'input window, operand 11']
    #allocation10 [shape = 'u8[1024]{0}', space=vmem, size = 0x400, scoped, tag = 'input window, operand 12']
    #allocation11 [shape = 's32[2]{0}', space=sflag, size = 0x8, scoped, tag = 'scoped memory for tpu_custom_call.1']
    #allocation12 [shape = 'u8[1024]{0}', space=vmem, size = 0x400, scoped, tag = 'input window, operand 13, single buffered']
    #allocation13 [shape = 'u8[512]{0}', space=vmem, size = 0x400, scoped, tag = 'input window, operand 14, single buffered']
    #allocation14 [shape = 's32[1]{0}', space=sflag, size = 0x4, scoped, tag = 'scoped memory for tpu_custom_call.1']
    #allocation15 [shape = 'u8[512]{0}', space=vmem, size = 0x400, scoped, tag = 'input window, operand 15, single buffered']
    #allocation16 [shape = 'u8[512]{0}', space=vmem, size = 0x400, scoped, tag = 'input window, operand 16, single buffered']
    #allocation17 [shape = 's32[1]{0}', space=sflag, size = 0x4, scoped, tag = 'scoped memory for tpu_custom_call.1']
    #allocation18 [shape = 'u8[512]{0}', space=vmem, size = 0x400, scoped, tag = 'input window, operand 17, single buffered']
    #allocation19 [shape = 'u8[1024]{0}', space=vmem, size = 0x400, scoped, tag = 'output window, operand 0, single buffered']
    %30 = vsyncpa [#allocation5], 0
    %s31 = scalar_lea.sflag [#allocation5], 1
    %32 = vsyncpa %s31, 0
    %33 = vsyncpa [#allocation8], 0
    %s34 = scalar_lea.sflag [#allocation8], 1
    %35 = vsyncpa %s34, 0
    %36 = vsyncpa [#allocation11], 0
    %s37 = scalar_lea.sflag [#allocation11], 1
    %38 = vsyncpa %s37, 0
    %39 = vsyncpa [#allocation14], 0
    %40 = vsyncpa [#allocation17], 0
    %41 = vsyncpa [#allocation6], 0
    loop: start=0, step=1, limit=4
    $region2: #{tpu_custom_call.1} parent=1 // loop_pre_header
      _
    $region3: #{tpu_custom_call.1} parent=1 // loop_header
      %s43 = sphi 0, %s47
      %p44 = scmp.ge.s32.totalorder %s43, 4
      %s53 = sphi 0, %s55
      %s56 = sphi 0, %s53
      %s57 = sphi 0, %s56
      %s73 = sphi 0, %s57
      %s79 = sphi 0, %s81
      %s82 = sphi 0, %s79
      %s83 = sphi 0, %s82
      %s99 = sphi 0, %s83
      %s105 = sphi 0, %s107
      %s108 = sphi 0, %s105
      %s109 = sphi 0, %s108
      %s125 = sphi 0, %s109
      %s131 = sphi 0, %s133
      %s134 = sphi 0, %s131
      %s135 = sphi 0, %s134
      %s151 = sphi 0, %s135
      %s157 = sphi 0, %s159
      %s160 = sphi 0, %s157
      %s161 = sphi 0, %s160
      %s177 = sphi 0, %s161
      %s183 = sphi 0, %s185
      %s186 = sphi 0, %s183
      %s187 = sphi 0, %s186
      %s203 = sphi 0, %s187
      %s209 = sphi 0, %s211
      %s212 = sphi 0, %s209
      %s213 = sphi 0, %s212
      %s229 = sphi 0, %s213
      %s235 = sphi 0, %s237
      %s238 = sphi 0, %s235
      %s239 = sphi 0, %s238
      %s255 = sphi 0, %s239
      %s261 = sphi 0, %s263
      %s264 = sphi 0, %s261
      %s265 = sphi 0, %s264
      %s281 = sphi 0, %s265
      %s287 = sphi 0, %s289
      %s290 = sphi 0, %s287
      %s291 = sphi 0, %s290
      %s307 = sphi 0, %s291
      %s313 = sphi 0, %s315
      %s316 = sphi 0, %s313
      %s317 = sphi 0, %s316
      %s333 = sphi 0, %s317
      %s339 = sphi 0, %s341
      %s342 = sphi 0, %s339
      %s343 = sphi 0, %s342
      %s359 = sphi 0, %s343
      %s363 = sphi 0, %s363
      %s365 = sphi 0, %s363
      %s366 = sphi 0, %s365
      %s380 = sphi 0, %s366
      %s384 = sphi 0, %s384
      %s386 = sphi 0, %s384
      %s387 = sphi 0, %s386
      %s401 = sphi 0, %s387
      %s405 = sphi 0, %s405
      %s407 = sphi 0, %s405
      %s408 = sphi 0, %s407
      %s422 = sphi 0, %s408
      %s426 = sphi 0, %s426
      %s428 = sphi 0, %s426
      %s429 = sphi 0, %s428
      %s443 = sphi 0, %s429
      %s447 = sphi 0, %s447
      %s449 = sphi 0, %s447
      %s450 = sphi 0, %s449
      %s464 = sphi 0, %s450
      %s468 = sphi 0, %s468
      %s470 = sphi 0, %s468
      %s471 = sphi 0, %s470
      %s485 = sphi 0, %s471
      %s489 = sphi 0, %s489
      %s491 = sphi 0, %s489
      %s492 = sphi 0, %s491
      %s506 = sphi 0, %s492
      %s510 = sphi 0, %s510
      %s512 = sphi 0, %s510
      %s513 = sphi 0, %s512
      %s527 = sphi 0, %s513
      %s531 = sphi 0, %s531
      %s533 = sphi 0, %s531
      %s534 = sphi 0, %s533
      %s548 = sphi 0, %s534
      %s552 = sphi 0, %s552
      %s554 = sphi 0, %s552
      %s555 = sphi 0, %s554
      %s569 = sphi 0, %s555
      %s573 = sphi 0, %s573
      %s575 = sphi 0, %s573
      %s576 = sphi 0, %s575
      %s590 = sphi 0, %s576
      %s594 = sphi 0, %s594
      %s596 = sphi 0, %s594
      %s597 = sphi 0, %s596
      %s611 = sphi 0, %s597
      %s615 = sphi 0, %s615
      %s617 = sphi 0, %s615
      %s618 = sphi 0, %s617
      %s632 = sphi 0, %s618
    $region4: #{tpu_custom_call.1} parent=1 // loop_header_branch
      %46 = sbr.rel (%p44) target = $region8
    $region5: #{tpu_custom_call.1} parent=1 // loop_body
      %s48 = ssub.s32 %s43, 1
      %s49 = ssub.s32 %s43, 2
      %s50 = sadd.s32 %s43, 1
      %s51 = ssub.s32 %s43, %s50
      %p52 = scmp.eq.s32.totalorder %s51, 0
      %s54 = sadd.s32 %s53, 1
      %s55 = scalar_select %p52, %s53, %s54
      %p58 = pneg %p52
      %p59 = scmp.eq.s32.totalorder %s43, 1
      %p60 = por %p58, %p59
      %p61 = scmp.ne.s32.totalorder %s53, %s56
      %p62 = scmp.eq.s32.totalorder %s43, 0
      %p63 = por %p61, %p62
      %p64 = scmp.ne.s32.totalorder %s53, %s56
      %p65 = scmp.eq.s32.totalorder %s48, 1
      %p66 = por %p64, %p65
      %p67 = scmp.ne.s32.totalorder %s56, %s57
      %p68 = scmp.eq.s32.totalorder %s48, 0
      %p69 = por %p67, %p68
      %p70 = scmp.ne.s32.totalorder %s56, %s57
      %p71 = scmp.eq.s32.totalorder %s49, 1
      %p72 = por %p70, %p71
      %p74 = scmp.ne.s32.totalorder %s57, %s73
      %p75 = scmp.eq.s32.totalorder %s49, 0
      %p76 = por %p74, %p75
      %s77 = ssub.s32 %s43, %s50
      %p78 = scmp.eq.s32.totalorder %s77, 0
      %s80 = sadd.s32 %s79, 1
      %s81 = scalar_select %p78, %s79, %s80
      %p84 = pneg %p78
      %p85 = scmp.eq.s32.totalorder %s43, 1
      %p86 = por %p84, %p85
      %p87 = scmp.ne.s32.totalorder %s79, %s82
      %p88 = scmp.eq.s32.totalorder %s43, 0
      %p89 = por %p87, %p88
      %p90 = scmp.ne.s32.totalorder %s79, %s82
      %p91 = scmp.eq.s32.totalorder %s48, 1
      %p92 = por %p90, %p91
      %p93 = scmp.ne.s32.totalorder %s82, %s83
      %p94 = scmp.eq.s32.totalorder %s48, 0
      %p95 = por %p93, %p94
      %p96 = scmp.ne.s32.totalorder %s82, %s83
      %p97 = scmp.eq.s32.totalorder %s49, 1
      %p98 = por %p96, %p97
      %p100 = scmp.ne.s32.totalorder %s83, %s99
      %p101 = scmp.eq.s32.totalorder %s49, 0
      %p102 = por %p100, %p101
      %s103 = ssub.s32 %s43, %s50
      %p104 = scmp.eq.s32.totalorder %s103, 0
      %s106 = sadd.s32 %s105, 1
      %s107 = scalar_select %p104, %s105, %s106
      %p110 = pneg %p104
      %p111 = scmp.eq.s32.totalorder %s43, 1
      %p112 = por %p110, %p111
      %p113 = scmp.ne.s32.totalorder %s105, %s108
      %p114 = scmp.eq.s32.totalorder %s43, 0
      %p115 = por %p113, %p114
      %p116 = scmp.ne.s32.totalorder %s105, %s108
      %p117 = scmp.eq.s32.totalorder %s48, 1
      %p118 = por %p116, %p117
      %p119 = scmp.ne.s32.totalorder %s108, %s109
      %p120 = scmp.eq.s32.totalorder %s48, 0
      %p121 = por %p119, %p120
      %p122 = scmp.ne.s32.totalorder %s108, %s109
      %p123 = scmp.eq.s32.totalorder %s49, 1
      %p124 = por %p122, %p123
      %p126 = scmp.ne.s32.totalorder %s109, %s125
      %p127 = scmp.eq.s32.totalorder %s49, 0
      %p128 = por %p126, %p127
      %s129 = ssub.s32 %s43, %s50
      %p130 = scmp.eq.s32.totalorder %s129, 0
      %s132 = sadd.s32 %s131, 1
      %s133 = scalar_select %p130, %s131, %s132
      %p136 = pneg %p130
      %p137 = scmp.eq.s32.totalorder %s43, 1
      %p138 = por %p136, %p137
      %p139 = scmp.ne.s32.totalorder %s131, %s134
      %p140 = scmp.eq.s32.totalorder %s43, 0
      %p141 = por %p139, %p140
      %p142 = scmp.ne.s32.totalorder %s131, %s134
      %p143 = scmp.eq.s32.totalorder %s48, 1
      %p144 = por %p142, %p143
      %p145 = scmp.ne.s32.totalorder %s134, %s135
      %p146 = scmp.eq.s32.totalorder %s48, 0
      %p147 = por %p145, %p146
      %p148 = scmp.ne.s32.totalorder %s134, %s135
      %p149 = scmp.eq.s32.totalorder %s49, 1
      %p150 = por %p148, %p149
      %p152 = scmp.ne.s32.totalorder %s135, %s151
      %p153 = scmp.eq.s32.totalorder %s49, 0
      %p154 = por %p152, %p153
      %s155 = ssub.s32 %s43, %s50
      %p156 = scmp.eq.s32.totalorder %s155, 0
      %s158 = sadd.s32 %s157, 1
      %s159 = scalar_select %p156, %s157, %s158
      %p162 = pneg %p156
      %p163 = scmp.eq.s32.totalorder %s43, 1
      %p164 = por %p162, %p163
      %p165 = scmp.ne.s32.totalorder %s157, %s160
      %p166 = scmp.eq.s32.totalorder %s43, 0
      %p167 = por %p165, %p166
      %p168 = scmp.ne.s32.totalorder %s157, %s160
      %p169 = scmp.eq.s32.totalorder %s48, 1
      %p170 = por %p168, %p169
      %p171 = scmp.ne.s32.totalorder %s160, %s161
      %p172 = scmp.eq.s32.totalorder %s48, 0
      %p173 = por %p171, %p172
      %p174 = scmp.ne.s32.totalorder %s160, %s161
      %p175 = scmp.eq.s32.totalorder %s49, 1
      %p176 = por %p174, %p175
      %p178 = scmp.ne.s32.totalorder %s161, %s177
      %p179 = scmp.eq.s32.totalorder %s49, 0
      %p180 = por %p178, %p179
      %s181 = ssub.s32 %s43, %s50
      %p182 = scmp.eq.s32.totalorder %s181, 0
      %s184 = sadd.s32 %s183, 1
      %s185 = scalar_select %p182, %s183, %s184
      %p188 = pneg %p182
      %p189 = scmp.eq.s32.totalorder %s43, 1
      %p190 = por %p188, %p189
      %p191 = scmp.ne.s32.totalorder %s183, %s186
      %p192 = scmp.eq.s32.totalorder %s43, 0
      %p193 = por %p191, %p192
      %p194 = scmp.ne.s32.totalorder %s183, %s186
      %p195 = scmp.eq.s32.totalorder %s48, 1
      %p196 = por %p194, %p195
      %p197 = scmp.ne.s32.totalorder %s186, %s187
      %p198 = scmp.eq.s32.totalorder %s48, 0
      %p199 = por %p197, %p198
      %p200 = scmp.ne.s32.totalorder %s186, %s187
      %p201 = scmp.eq.s32.totalorder %s49, 1
      %p202 = por %p200, %p201
      %p204 = scmp.ne.s32.totalorder %s187, %s203
      %p205 = scmp.eq.s32.totalorder %s49, 0
      %p206 = por %p204, %p205
      %s207 = ssub.s32 %s43, %s50
      %p208 = scmp.eq.s32.totalorder %s207, 0
      %s210 = sadd.s32 %s209, 1
      %s211 = scalar_select %p208, %s209, %s210
      %p214 = pneg %p208
      %p215 = scmp.eq.s32.totalorder %s43, 1
      %p216 = por %p214, %p215
      %p217 = scmp.ne.s32.totalorder %s209, %s212
      %p218 = scmp.eq.s32.totalorder %s43, 0
      %p219 = por %p217, %p218
      %p220 = scmp.ne.s32.totalorder %s209, %s212
      %p221 = scmp.eq.s32.totalorder %s48, 1
      %p222 = por %p220, %p221
      %p223 = scmp.ne.s32.totalorder %s212, %s213
      %p224 = scmp.eq.s32.totalorder %s48, 0
      %p225 = por %p223, %p224
      %p226 = scmp.ne.s32.totalorder %s212, %s213
      %p227 = scmp.eq.s32.totalorder %s49, 1
      %p228 = por %p226, %p227
      %p230 = scmp.ne.s32.totalorder %s213, %s229
      %p231 = scmp.eq.s32.totalorder %s49, 0
      %p232 = por %p230, %p231
      %s233 = ssub.s32 %s43, %s50
      %p234 = scmp.eq.s32.totalorder %s233, 0
      %s236 = sadd.s32 %s235, 1
      %s237 = scalar_select %p234, %s235, %s236
      %p240 = pneg %p234
      %p241 = scmp.eq.s32.totalorder %s43, 1
      %p242 = por %p240, %p241
      %p243 = scmp.ne.s32.totalorder %s235, %s238
      %p244 = scmp.eq.s32.totalorder %s43, 0
      %p245 = por %p243, %p244
      %p246 = scmp.ne.s32.totalorder %s235, %s238
      %p247 = scmp.eq.s32.totalorder %s48, 1
      %p248 = por %p246, %p247
      %p249 = scmp.ne.s32.totalorder %s238, %s239
      %p250 = scmp.eq.s32.totalorder %s48, 0
      %p251 = por %p249, %p250
      %p252 = scmp.ne.s32.totalorder %s238, %s239
      %p253 = scmp.eq.s32.totalorder %s49, 1
      %p254 = por %p252, %p253
      %p256 = scmp.ne.s32.totalorder %s239, %s255
      %p257 = scmp.eq.s32.totalorder %s49, 0
      %p258 = por %p256, %p257
      %s259 = ssub.s32 %s43, %s50
      %p260 = scmp.eq.s32.totalorder %s259, 0
      %s262 = sadd.s32 %s261, 1
      %s263 = scalar_select %p260, %s261, %s262
      %p266 = pneg %p260
      %p267 = scmp.eq.s32.totalorder %s43, 1
      %p268 = por %p266, %p267
      %p269 = scmp.ne.s32.totalorder %s261, %s264
      %p270 = scmp.eq.s32.totalorder %s43, 0
      %p271 = por %p269, %p270
      %p272 = scmp.ne.s32.totalorder %s261, %s264
      %p273 = scmp.eq.s32.totalorder %s48, 1
      %p274 = por %p272, %p273
      %p275 = scmp.ne.s32.totalorder %s264, %s265
      %p276 = scmp.eq.s32.totalorder %s48, 0
      %p277 = por %p275, %p276
      %p278 = scmp.ne.s32.totalorder %s264, %s265
      %p279 = scmp.eq.s32.totalorder %s49, 1
      %p280 = por %p278, %p279
      %p282 = scmp.ne.s32.totalorder %s265, %s281
      %p283 = scmp.eq.s32.totalorder %s49, 0
      %p284 = por %p282, %p283
      %s285 = ssub.s32 %s43, %s50
      %p286 = scmp.eq.s32.totalorder %s285, 0
      %s288 = sadd.s32 %s287, 1
      %s289 = scalar_select %p286, %s287, %s288
      %p292 = pneg %p286
      %p293 = scmp.eq.s32.totalorder %s43, 1
      %p294 = por %p292, %p293
      %p295 = scmp.ne.s32.totalorder %s287, %s290
      %p296 = scmp.eq.s32.totalorder %s43, 0
      %p297 = por %p295, %p296
      %p298 = scmp.ne.s32.totalorder %s287, %s290
      %p299 = scmp.eq.s32.totalorder %s48, 1
      %p300 = por %p298, %p299
      %p301 = scmp.ne.s32.totalorder %s290, %s291
      %p302 = scmp.eq.s32.totalorder %s48, 0
      %p303 = por %p301, %p302
      %p304 = scmp.ne.s32.totalorder %s290, %s291
      %p305 = scmp.eq.s32.totalorder %s49, 1
      %p306 = por %p304, %p305
      %p308 = scmp.ne.s32.totalorder %s291, %s307
      %p309 = scmp.eq.s32.totalorder %s49, 0
      %p310 = por %p308, %p309
      %s311 = ssub.s32 %s43, %s50
      %p312 = scmp.eq.s32.totalorder %s311, 0
      %s314 = sadd.s32 %s313, 1
      %s315 = scalar_select %p312, %s313, %s314
      %p318 = pneg %p312
      %p319 = scmp.eq.s32.totalorder %s43, 1
      %p320 = por %p318, %p319
      %p321 = scmp.ne.s32.totalorder %s313, %s316
      %p322 = scmp.eq.s32.totalorder %s43, 0
      %p323 = por %p321, %p322
      %p324 = scmp.ne.s32.totalorder %s313, %s316
      %p325 = scmp.eq.s32.totalorder %s48, 1
      %p326 = por %p324, %p325
      %p327 = scmp.ne.s32.totalorder %s316, %s317
      %p328 = scmp.eq.s32.totalorder %s48, 0
      %p329 = por %p327, %p328
      %p330 = scmp.ne.s32.totalorder %s316, %s317
      %p331 = scmp.eq.s32.totalorder %s49, 1
      %p332 = por %p330, %p331
      %p334 = scmp.ne.s32.totalorder %s317, %s333
      %p335 = scmp.eq.s32.totalorder %s49, 0
      %p336 = por %p334, %p335
      %s337 = ssub.s32 %s43, %s50
      %p338 = scmp.eq.s32.totalorder %s337, 0
      %s340 = sadd.s32 %s339, 1
      %s341 = scalar_select %p338, %s339, %s340
      %p344 = pneg %p338
      %p345 = scmp.eq.s32.totalorder %s43, 1
      %p346 = por %p344, %p345
      %p347 = scmp.ne.s32.totalorder %s339, %s342
      %p348 = scmp.eq.s32.totalorder %s43, 0
      %p349 = por %p347, %p348
      %p350 = scmp.ne.s32.totalorder %s339, %s342
      %p351 = scmp.eq.s32.totalorder %s48, 1
      %p352 = por %p350, %p351
      %p353 = scmp.ne.s32.totalorder %s342, %s343
      %p354 = scmp.eq.s32.totalorder %s48, 0
      %p355 = por %p353, %p354
      %p356 = scmp.ne.s32.totalorder %s342, %s343
      %p357 = scmp.eq.s32.totalorder %s49, 1
      %p358 = por %p356, %p357
      %p360 = scmp.ne.s32.totalorder %s343, %s359
      %p361 = scmp.eq.s32.totalorder %s49, 0
      %p362 = por %p360, %p361
      %s364 = sadd.s32 %s363, 1
      %p367 = scmp.eq.s32.totalorder %s43, 1
      %p368 = scmp.ne.s32.totalorder %s363, %s365
      %p369 = scmp.eq.s32.totalorder %s43, 0
      %p370 = por %p368, %p369
      %p371 = scmp.ne.s32.totalorder %s363, %s365
      %p372 = scmp.eq.s32.totalorder %s48, 1
      %p373 = por %p371, %p372
      %p374 = scmp.ne.s32.totalorder %s365, %s366
      %p375 = scmp.eq.s32.totalorder %s48, 0
      %p376 = por %p374, %p375
      %p377 = scmp.ne.s32.totalorder %s365, %s366
      %p378 = scmp.eq.s32.totalorder %s49, 1
      %p379 = por %p377, %p378
      %p381 = scmp.ne.s32.totalorder %s366, %s380
      %p382 = scmp.eq.s32.totalorder %s49, 0
      %p383 = por %p381, %p382
      %s385 = sadd.s32 %s384, 1
      %p388 = scmp.eq.s32.totalorder %s43, 1
      %p389 = scmp.ne.s32.totalorder %s384, %s386
      %p390 = scmp.eq.s32.totalorder %s43, 0
      %p391 = por %p389, %p390
      %p392 = scmp.ne.s32.totalorder %s384, %s386
      %p393 = scmp.eq.s32.totalorder %s48, 1
      %p394 = por %p392, %p393
      %p395 = scmp.ne.s32.totalorder %s386, %s387
      %p396 = scmp.eq.s32.totalorder %s48, 0
      %p397 = por %p395, %p396
      %p398 = scmp.ne.s32.totalorder %s386, %s387
      %p399 = scmp.eq.s32.totalorder %s49, 1
      %p400 = por %p398, %p399
      %p402 = scmp.ne.s32.totalorder %s387, %s401
      %p403 = scmp.eq.s32.totalorder %s49, 0
      %p404 = por %p402, %p403
      %s406 = sadd.s32 %s405, 1
      %p409 = scmp.eq.s32.totalorder %s43, 1
      %p410 = scmp.ne.s32.totalorder %s405, %s407
      %p411 = scmp.eq.s32.totalorder %s43, 0
      %p412 = por %p410, %p411
      %p413 = scmp.ne.s32.totalorder %s405, %s407
      %p414 = scmp.eq.s32.totalorder %s48, 1
      %p415 = por %p413, %p414
      %p416 = scmp.ne.s32.totalorder %s407, %s408
      %p417 = scmp.eq.s32.totalorder %s48, 0
      %p418 = por %p416, %p417
      %p419 = scmp.ne.s32.totalorder %s407, %s408
      %p420 = scmp.eq.s32.totalorder %s49, 1
      %p421 = por %p419, %p420
      %p423 = scmp.ne.s32.totalorder %s408, %s422
      %p424 = scmp.eq.s32.totalorder %s49, 0
      %p425 = por %p423, %p424
      %s427 = sadd.s32 %s426, 1
      %p430 = scmp.eq.s32.totalorder %s43, 1
      %p431 = scmp.ne.s32.totalorder %s426, %s428
      %p432 = scmp.eq.s32.totalorder %s43, 0
      %p433 = por %p431, %p432
      %p434 = scmp.ne.s32.totalorder %s426, %s428
      %p435 = scmp.eq.s32.totalorder %s48, 1
      %p436 = por %p434, %p435
      %p437 = scmp.ne.s32.totalorder %s428, %s429
      %p438 = scmp.eq.s32.totalorder %s48, 0
      %p439 = por %p437, %p438
      %p440 = scmp.ne.s32.totalorder %s428, %s429
      %p441 = scmp.eq.s32.totalorder %s49, 1
      %p442 = por %p440, %p441
      %p444 = scmp.ne.s32.totalorder %s429, %s443
      %p445 = scmp.eq.s32.totalorder %s49, 0
      %p446 = por %p444, %p445
      %s448 = sadd.s32 %s447, 1
      %p451 = scmp.eq.s32.totalorder %s43, 1
      %p452 = scmp.ne.s32.totalorder %s447, %s449
      %p453 = scmp.eq.s32.totalorder %s43, 0
      %p454 = por %p452, %p453
      %p455 = scmp.ne.s32.totalorder %s447, %s449
      %p456 = scmp.eq.s32.totalorder %s48, 1
      %p457 = por %p455, %p456
      %p458 = scmp.ne.s32.totalorder %s449, %s450
      %p459 = scmp.eq.s32.totalorder %s48, 0
      %p460 = por %p458, %p459
      %p461 = scmp.ne.s32.totalorder %s449, %s450
      %p462 = scmp.eq.s32.totalorder %s49, 1
      %p463 = por %p461, %p462
      %p465 = scmp.ne.s32.totalorder %s450, %s464
      %p466 = scmp.eq.s32.totalorder %s49, 0
      %p467 = por %p465, %p466
      %s469 = sadd.s32 %s468, 1
      %p472 = scmp.eq.s32.totalorder %s43, 1
      %p473 = scmp.ne.s32.totalorder %s468, %s470
      %p474 = scmp.eq.s32.totalorder %s43, 0
      %p475 = por %p473, %p474
      %p476 = scmp.ne.s32.totalorder %s468, %s470
      %p477 = scmp.eq.s32.totalorder %s48, 1
      %p478 = por %p476, %p477
      %p479 = scmp.ne.s32.totalorder %s470, %s471
      %p480 = scmp.eq.s32.totalorder %s48, 0
      %p481 = por %p479, %p480
      %p482 = scmp.ne.s32.totalorder %s470, %s471
      %p483 = scmp.eq.s32.totalorder %s49, 1
      %p484 = por %p482, %p483
      %p486 = scmp.ne.s32.totalorder %s471, %s485
      %p487 = scmp.eq.s32.totalorder %s49, 0
      %p488 = por %p486, %p487
      %s490 = sadd.s32 %s489, 1
      %p493 = scmp.eq.s32.totalorder %s43, 1
      %p494 = scmp.ne.s32.totalorder %s489, %s491
      %p495 = scmp.eq.s32.totalorder %s43, 0
      %p496 = por %p494, %p495
      %p497 = scmp.ne.s32.totalorder %s489, %s491
      %p498 = scmp.eq.s32.totalorder %s48, 1
      %p499 = por %p497, %p498
      %p500 = scmp.ne.s32.totalorder %s491, %s492
      %p501 = scmp.eq.s32.totalorder %s48, 0
      %p502 = por %p500, %p501
      %p503 = scmp.ne.s32.totalorder %s491, %s492
      %p504 = scmp.eq.s32.totalorder %s49, 1
      %p505 = por %p503, %p504
      %p507 = scmp.ne.s32.totalorder %s492, %s506
      %p508 = scmp.eq.s32.totalorder %s49, 0
      %p509 = por %p507, %p508
      %s511 = sadd.s32 %s510, 1
      %p514 = scmp.eq.s32.totalorder %s43, 1
      %p515 = scmp.ne.s32.totalorder %s510, %s512
      %p516 = scmp.eq.s32.totalorder %s43, 0
      %p517 = por %p515, %p516
      %p518 = scmp.ne.s32.totalorder %s510, %s512
      %p519 = scmp.eq.s32.totalorder %s48, 1
      %p520 = por %p518, %p519
      %p521 = scmp.ne.s32.totalorder %s512, %s513
      %p522 = scmp.eq.s32.totalorder %s48, 0
      %p523 = por %p521, %p522
      %p524 = scmp.ne.s32.totalorder %s512, %s513
      %p525 = scmp.eq.s32.totalorder %s49, 1
      %p526 = por %p524, %p525
      %p528 = scmp.ne.s32.totalorder %s513, %s527
      %p529 = scmp.eq.s32.totalorder %s49, 0
      %p530 = por %p528, %p529
      %s532 = sadd.s32 %s531, 1
      %p535 = scmp.eq.s32.totalorder %s43, 1
      %p536 = scmp.ne.s32.totalorder %s531, %s533
      %p537 = scmp.eq.s32.totalorder %s43, 0
      %p538 = por %p536, %p537
      %p539 = scmp.ne.s32.totalorder %s531, %s533
      %p540 = scmp.eq.s32.totalorder %s48, 1
      %p541 = por %p539, %p540
      %p542 = scmp.ne.s32.totalorder %s533, %s534
      %p543 = scmp.eq.s32.totalorder %s48, 0
      %p544 = por %p542, %p543
      %p545 = scmp.ne.s32.totalorder %s533, %s534
      %p546 = scmp.eq.s32.totalorder %s49, 1
      %p547 = por %p545, %p546
      %p549 = scmp.ne.s32.totalorder %s534, %s548
      %p550 = scmp.eq.s32.totalorder %s49, 0
      %p551 = por %p549, %p550
      %s553 = sadd.s32 %s552, 1
      %p556 = scmp.eq.s32.totalorder %s43, 1
      %p557 = scmp.ne.s32.totalorder %s552, %s554
      %p558 = scmp.eq.s32.totalorder %s43, 0
      %p559 = por %p557, %p558
      %p560 = scmp.ne.s32.totalorder %s552, %s554
      %p561 = scmp.eq.s32.totalorder %s48, 1
      %p562 = por %p560, %p561
      %p563 = scmp.ne.s32.totalorder %s554, %s555
      %p564 = scmp.eq.s32.totalorder %s48, 0
      %p565 = por %p563, %p564
      %p566 = scmp.ne.s32.totalorder %s554, %s555
      %p567 = scmp.eq.s32.totalorder %s49, 1
      %p568 = por %p566, %p567
      %p570 = scmp.ne.s32.totalorder %s555, %s569
      %p571 = scmp.eq.s32.totalorder %s49, 0
      %p572 = por %p570, %p571
      %s574 = sadd.s32 %s573, 1
      %p577 = scmp.eq.s32.totalorder %s43, 1
      %p578 = scmp.ne.s32.totalorder %s573, %s575
      %p579 = scmp.eq.s32.totalorder %s43, 0
      %p580 = por %p578, %p579
      %p581 = scmp.ne.s32.totalorder %s573, %s575
      %p582 = scmp.eq.s32.totalorder %s48, 1
      %p583 = por %p581, %p582
      %p584 = scmp.ne.s32.totalorder %s575, %s576
      %p585 = scmp.eq.s32.totalorder %s48, 0
      %p586 = por %p584, %p585
      %p587 = scmp.ne.s32.totalorder %s575, %s576
      %p588 = scmp.eq.s32.totalorder %s49, 1
      %p589 = por %p587, %p588
      %p591 = scmp.ne.s32.totalorder %s576, %s590
      %p592 = scmp.eq.s32.totalorder %s49, 0
      %p593 = por %p591, %p592
      %s595 = sadd.s32 %s594, 1
      %p598 = scmp.eq.s32.totalorder %s43, 1
      %p599 = scmp.ne.s32.totalorder %s594, %s596
      %p600 = scmp.eq.s32.totalorder %s43, 0
      %p601 = por %p599, %p600
      %p602 = scmp.ne.s32.totalorder %s594, %s596
      %p603 = scmp.eq.s32.totalorder %s48, 1
      %p604 = por %p602, %p603
      %p605 = scmp.ne.s32.totalorder %s596, %s597
      %p606 = scmp.eq.s32.totalorder %s48, 0
      %p607 = por %p605, %p606
      %p608 = scmp.ne.s32.totalorder %s596, %s597
      %p609 = scmp.eq.s32.totalorder %s49, 1
      %p610 = por %p608, %p609
      %p612 = scmp.ne.s32.totalorder %s597, %s611
      %p613 = scmp.eq.s32.totalorder %s49, 0
      %p614 = por %p612, %p613
      %s616 = sadd.s32 %s615, 1
      %p619 = scmp.eq.s32.totalorder %s43, 1
      %p620 = scmp.ne.s32.totalorder %s615, %s617
      %p621 = scmp.eq.s32.totalorder %s43, 0
      %p622 = por %p620, %p621
      %p623 = scmp.ne.s32.totalorder %s615, %s617
      %p624 = scmp.eq.s32.totalorder %s48, 1
      %p625 = por %p623, %p624
      %p626 = scmp.ne.s32.totalorder %s617, %s618
      %p627 = scmp.eq.s32.totalorder %s48, 0
      %p628 = por %p626, %p627
      %p629 = scmp.ne.s32.totalorder %s617, %s618
      %p630 = scmp.eq.s32.totalorder %s49, 1
      %p631 = por %p629, %p630
      %p633 = scmp.ne.s32.totalorder %s618, %s632
      %p634 = scmp.eq.s32.totalorder %s49, 0
      %p635 = por %p633, %p634
      %p636 = scmp.le.s32.totalorder 1, %s43
      %p637 = scmp.lt.s32.totalorder %s43, 3
      %p638 = pnand %p636, %p637
      %p639 = pneg %p638
      // Predicated region
      $region9: #{tpu_custom_call.1} parent=5 // pred_check
        _
      $region10: #{tpu_custom_call.1} parent=5 // pred_check_branch
        %641 = sbr.rel (%p638) target = $region12
      $region11: #{tpu_custom_call.1} parent=5 // pred_region
        %s642 = ssub.s32 %s43, 1
        // Predicated region
        $region13: #{tpu_custom_call.1} parent=11 // pred_check
          %p643 = pneg %p376
        $region14: #{tpu_custom_call.1} parent=11 // pred_check_branch
          %645 = sbr.rel (%p643) target = $region16
        $region15: #{tpu_custom_call.1} parent=11 // pred_region
          %647 = vsyncadd [#allocation11], 0
          %s649 = sshll.u32 %s13, 4
          %s650 = int_to_ptr.hbm [resolvable:$true] %s649
          %s651 = sshll.u32 [#allocation12], 4
          %s652 = int_to_ptr.vmem [resolvable:$true] %s651
          %654 = dma.hbm_to_vmem [thread:$0]  %s650, 32, %s652, [#allocation11]
        $region16: #{tpu_custom_call.1} parent=11 // pred_fallthru
          _
        // Predicated region
        $region17: #{tpu_custom_call.1} parent=11 // pred_check
          %p655 = pneg %p397
        $region18: #{tpu_custom_call.1} parent=11 // pred_check_branch
          %657 = sbr.rel (%p655) target = $region20
        $region19: #{tpu_custom_call.1} parent=11 // pred_region
          %659 = vsyncadd [#allocation14], 0
          %s661 = sshll.u32 %s14, 4
          %s662 = int_to_ptr.hbm [resolvable:$true] %s661
          %s663 = sshll.u32 [#allocation13], 4
          %s664 = int_to_ptr.vmem [resolvable:$true] %s663
          %666 = dma.hbm_to_vmem [thread:$0]  %s662, 16, %s664, [#allocation14]
        $region20: #{tpu_custom_call.1} parent=11 // pred_fallthru
          _
        // Predicated region
        $region21: #{tpu_custom_call.1} parent=11 // pred_check
          %p667 = pneg %p418
        $region22: #{tpu_custom_call.1} parent=11 // pred_check_branch
          %669 = sbr.rel (%p667) target = $region24
        $region23: #{tpu_custom_call.1} parent=11 // pred_region
          %671 = vsyncadd [#allocation14], 0
          %s673 = sshll.u32 %s15, 4
          %s674 = int_to_ptr.hbm [resolvable:$true] %s673
          %s675 = sshll.u32 [#allocation15], 4
          %s676 = int_to_ptr.vmem [resolvable:$true] %s675
          %678 = dma.hbm_to_vmem [thread:$0]  %s674, 16, %s676, [#allocation14]
        $region24: #{tpu_custom_call.1} parent=11 // pred_fallthru
          _
        // Predicated region
        $region25: #{tpu_custom_call.1} parent=11 // pred_check
          %p679 = pneg %p439
        $region26: #{tpu_custom_call.1} parent=11 // pred_check_branch
          %681 = sbr.rel (%p679) target = $region28
        $region27: #{tpu_custom_call.1} parent=11 // pred_region
          %683 = vsyncadd [#allocation17], 0
          %s685 = sshll.u32 %s16, 4
          %s686 = int_to_ptr.hbm [resolvable:$true] %s685
          %s687 = sshll.u32 [#allocation16], 4
          %s688 = int_to_ptr.vmem [resolvable:$true] %s687
          %690 = dma.hbm_to_vmem [thread:$0]  %s686, 16, %s688, [#allocation17]
        $region28: #{tpu_custom_call.1} parent=11 // pred_fallthru
          _
        // Predicated region
        $region29: #{tpu_custom_call.1} parent=11 // pred_check
          %p691 = pneg %p460
        $region30: #{tpu_custom_call.1} parent=11 // pred_check_branch
          %693 = sbr.rel (%p691) target = $region32
        $region31: #{tpu_custom_call.1} parent=11 // pred_region
          %695 = vsyncadd [#allocation17], 0
          %s697 = sshll.u32 %s17, 4
          %s698 = int_to_ptr.hbm [resolvable:$true] %s697
          %s699 = sshll.u32 [#allocation18], 4
          %s700 = int_to_ptr.vmem [resolvable:$true] %s699
          %702 = dma.hbm_to_vmem [thread:$0]  %s698, 16, %s700, [#allocation17]
        $region32: #{tpu_custom_call.1} parent=11 // pred_fallthru
          _
        // Predicated region
        $region33: #{tpu_custom_call.1} parent=11 // pred_check
          %p703 = pneg %p481
        $region34: #{tpu_custom_call.1} parent=11 // pred_check_branch
          %705 = sbr.rel (%p703) target = $region36
        $region35: #{tpu_custom_call.1} parent=11 // pred_region
          _
        $region36: #{tpu_custom_call.1} parent=11 // pred_fallthru
          _
        // Predicated region
        $region37: #{tpu_custom_call.1} parent=11 // pred_check
          %p706 = pneg %p502
        $region38: #{tpu_custom_call.1} parent=11 // pred_check_branch
          %708 = sbr.rel (%p706) target = $region40
        $region39: #{tpu_custom_call.1} parent=11 // pred_region
          _
        $region40: #{tpu_custom_call.1} parent=11 // pred_fallthru
          _
        // Predicated region
        $region41: #{tpu_custom_call.1} parent=11 // pred_check
          %p709 = pneg %p523
        $region42: #{tpu_custom_call.1} parent=11 // pred_check_branch
          %711 = sbr.rel (%p709) target = $region44
        $region43: #{tpu_custom_call.1} parent=11 // pred_region
          _
        $region44: #{tpu_custom_call.1} parent=11 // pred_fallthru
          _
        // Predicated region
        $region45: #{tpu_custom_call.1} parent=11 // pred_check
          %p712 = pneg %p544
        $region46: #{tpu_custom_call.1} parent=11 // pred_check_branch
          %714 = sbr.rel (%p712) target = $region48
        $region47: #{tpu_custom_call.1} parent=11 // pred_region
          _
        $region48: #{tpu_custom_call.1} parent=11 // pred_fallthru
          _
        // Predicated region
        $region49: #{tpu_custom_call.1} parent=11 // pred_check
          %p715 = pneg %p565
        $region50: #{tpu_custom_call.1} parent=11 // pred_check_branch
          %717 = sbr.rel (%p715) target = $region52
        $region51: #{tpu_custom_call.1} parent=11 // pred_region
          _
        $region52: #{tpu_custom_call.1} parent=11 // pred_fallthru
          _
        // Predicated region
        $region53: #{tpu_custom_call.1} parent=11 // pred_check
          %p718 = pneg %p586
        $region54: #{tpu_custom_call.1} parent=11 // pred_check_branch
          %720 = sbr.rel (%p718) target = $region56
        $region55: #{tpu_custom_call.1} parent=11 // pred_region
          _
        $region56: #{tpu_custom_call.1} parent=11 // pred_fallthru
          _
        // Predicated region
        $region57: #{tpu_custom_call.1} parent=11 // pred_check
          %p721 = pneg %p607
        $region58: #{tpu_custom_call.1} parent=11 // pred_check_branch
          %723 = sbr.rel (%p721) target = $region60
        $region59: #{tpu_custom_call.1} parent=11 // pred_region
          _
        $region60: #{tpu_custom_call.1} parent=11 // pred_fallthru
          _
      $region12: #{tpu_custom_call.1} parent=5 // pred_fallthru
        _
      %p724 = scmp.lt.s32.totalorder %s43, 2
      // Predicated region
      $region61: #{tpu_custom_call.1} parent=5 // pred_check
        %p725 = pneg %p724
      $region62: #{tpu_custom_call.1} parent=5 // pred_check_branch
        %727 = sbr.rel (%p725) target = $region64
      $region63: #{tpu_custom_call.1} parent=5 // pred_region
        // Predicated region
        $region65: #{tpu_custom_call.1} parent=63 // pred_check
          %p728 = pneg %p63
        $region66: #{tpu_custom_call.1} parent=63 // pred_check_branch
          %730 = sbr.rel (%p728) target = $region68
        $region67: #{tpu_custom_call.1} parent=63 // pred_region
          %p731 = scmp.lt.s32.totalorder %s43, 1
          %s732 = scalar_select %p731, %s43, 1
          %s733 = smul.addr %s732, 4
          %s734 = smul.addr %s733, 4
          %s735 = scalar_lea.vmem %s1, %s734
        $region68: #{tpu_custom_call.1} parent=63 // pred_fallthru
          _
        // Predicated region
        $region69: #{tpu_custom_call.1} parent=63 // pred_check
          %p736 = pneg %p89
        $region70: #{tpu_custom_call.1} parent=63 // pred_check_branch
          %738 = sbr.rel (%p736) target = $region72
        $region71: #{tpu_custom_call.1} parent=63 // pred_region
          %p739 = scmp.lt.s32.totalorder %s43, 1
          %s740 = scalar_select %p739, %s43, 1
          %s741 = scalar_lea.vmem %s2, %s740
        $region72: #{tpu_custom_call.1} parent=63 // pred_fallthru
          _
        // Predicated region
        $region73: #{tpu_custom_call.1} parent=63 // pred_check
          %p742 = pneg %p115
        $region74: #{tpu_custom_call.1} parent=63 // pred_check_branch
          %744 = sbr.rel (%p742) target = $region76
        $region75: #{tpu_custom_call.1} parent=63 // pred_region
          %p745 = scmp.lt.s32.totalorder %s43, 1
          %s746 = scalar_select %p745, %s43, 1
          %s747 = smul.addr %s746, 4
          %s748 = smul.addr %s747, 4
          %s749 = scalar_lea.vmem %s3, %s748
        $region76: #{tpu_custom_call.1} parent=63 // pred_fallthru
          _
        // Predicated region
        $region77: #{tpu_custom_call.1} parent=63 // pred_check
          %p750 = pneg %p141
        $region78: #{tpu_custom_call.1} parent=63 // pred_check_branch
          %752 = sbr.rel (%p750) target = $region80
        $region79: #{tpu_custom_call.1} parent=63 // pred_region
          %p753 = scmp.lt.s32.totalorder %s43, 1
          %s754 = scalar_select %p753, %s43, 1
          %s755 = scalar_lea.vmem %s4, %s754
        $region80: #{tpu_custom_call.1} parent=63 // pred_fallthru
          _
        // Predicated region
        $region81: #{tpu_custom_call.1} parent=63 // pred_check
          %p756 = pneg %p167
        $region82: #{tpu_custom_call.1} parent=63 // pred_check_branch
          %758 = sbr.rel (%p756) target = $region84
        $region83: #{tpu_custom_call.1} parent=63 // pred_region
          %p759 = scmp.lt.s32.totalorder %s43, 1
          %s760 = scalar_select %p759, %s43, 1
          %s761 = scalar_lea.vmem %s5, %s760
        $region84: #{tpu_custom_call.1} parent=63 // pred_fallthru
          _
        // Predicated region
        $region85: #{tpu_custom_call.1} parent=63 // pred_check
          %p762 = pneg %p193
        $region86: #{tpu_custom_call.1} parent=63 // pred_check_branch
          %764 = sbr.rel (%p762) target = $region88
        $region87: #{tpu_custom_call.1} parent=63 // pred_region
          %p765 = scmp.lt.s32.totalorder %s43, 1
          %s766 = scalar_select %p765, %s43, 1
          %s767 = scalar_lea.vmem %s6, %s766
        $region88: #{tpu_custom_call.1} parent=63 // pred_fallthru
          _
        // Predicated region
        $region89: #{tpu_custom_call.1} parent=63 // pred_check
          %p768 = pneg %p219
        $region90: #{tpu_custom_call.1} parent=63 // pred_check_branch
          %770 = sbr.rel (%p768) target = $region92
        $region91: #{tpu_custom_call.1} parent=63 // pred_region
          %p771 = scmp.lt.s32.totalorder %s43, 1
          %s772 = scalar_select %p771, %s43, 1
          %s773 = smul.addr %s772, 4
          %s774 = smul.addr %s773, 4
          %s775 = scalar_lea.vmem %s7, %s774
        $region92: #{tpu_custom_call.1} parent=63 // pred_fallthru
          _
        // Predicated region
        $region93: #{tpu_custom_call.1} parent=63 // pred_check
          %p776 = pneg %p245
        $region94: #{tpu_custom_call.1} parent=63 // pred_check_branch
          %778 = sbr.rel (%p776) target = $region96
        $region95: #{tpu_custom_call.1} parent=63 // pred_region
          %s779 = sand.u32 %s235, 1
          %s780 = scalar_lea.sflag [#allocation5], %s779
          %s781 = sand.u32 %s235, 1
          %s782 = scalar_lea.vmem [#allocation4], %s781
          %784 = vsyncadd %s780, 0
          %s785 = scalar_lea.hbm %s8, %s43
          %s787 = sshll.u32 %s785, 4
          %s788 = int_to_ptr.hbm [resolvable:$true] %s787
          %s789 = sshll.u32 %s782, 4
          %s790 = int_to_ptr.vmem [resolvable:$true] %s789
          %792 = dma.hbm_to_vmem [thread:$0]  %s788, 16, %s790, %s780
        $region96: #{tpu_custom_call.1} parent=63 // pred_fallthru
          _
        // Predicated region
        $region97: #{tpu_custom_call.1} parent=63 // pred_check
          %p793 = pneg %p271
        $region98: #{tpu_custom_call.1} parent=63 // pred_check_branch
          %795 = sbr.rel (%p793) target = $region100
        $region99: #{tpu_custom_call.1} parent=63 // pred_region
          %p796 = scmp.lt.s32.totalorder %s43, 1
          %s797 = scalar_select %p796, %s43, 1
          %s798 = smul.addr %s797, 16
          %s799 = smul.addr %s798, 4
          %s800 = scalar_lea.vmem %s9, %s799
        $region100: #{tpu_custom_call.1} parent=63 // pred_fallthru
          _
        // Predicated region
        $region101: #{tpu_custom_call.1} parent=63 // pred_check
          %p801 = pneg %p297
        $region102: #{tpu_custom_call.1} parent=63 // pred_check_branch
          %803 = sbr.rel (%p801) target = $region104
        $region103: #{tpu_custom_call.1} parent=63 // pred_region
          %s804 = sand.u32 %s43, 1
          %s805 = scalar_lea.sflag [#allocation8], %s804
          %s806 = sand.u32 %s287, 1
          %s807 = scalar_lea.vmem [#allocation7], %s806
          %809 = vsyncadd %s805, 0
          %s810 = scalar_lea.hbm %s10, %s43
          %s812 = sshll.u32 %s810, 4
          %s813 = int_to_ptr.hbm [resolvable:$true] %s812
          %s814 = sshll.u32 %s807, 4
          %s815 = int_to_ptr.vmem [resolvable:$true] %s814
          %817 = dma.hbm_to_vmem [thread:$0]  %s813, 16, %s815, %s805
        $region104: #{tpu_custom_call.1} parent=63 // pred_fallthru
          _
        // Predicated region
        $region105: #{tpu_custom_call.1} parent=63 // pred_check
          %p818 = pneg %p323
        $region106: #{tpu_custom_call.1} parent=63 // pred_check_branch
          %820 = sbr.rel (%p818) target = $region108
        $region107: #{tpu_custom_call.1} parent=63 // pred_region
          %s821 = sand.u32 %s43, 1
          %s822 = scalar_lea.sflag [#allocation8], %s821
          %s823 = sand.u32 %s313, 1
          %s824 = scalar_lea.vmem [#allocation9], %s823
          %826 = vsyncadd %s822, 0
          %s827 = scalar_lea.hbm %s11, %s43
          %s829 = sshll.u32 %s827, 4
          %s830 = int_to_ptr.hbm [resolvable:$true] %s829
          %s831 = sshll.u32 %s824, 4
          %s832 = int_to_ptr.vmem [resolvable:$true] %s831
          %834 = dma.hbm_to_vmem [thread:$0]  %s830, 16, %s832, %s822
        $region108: #{tpu_custom_call.1} parent=63 // pred_fallthru
          _
        // Predicated region
        $region109: #{tpu_custom_call.1} parent=63 // pred_check
          %p835 = pneg %p349
        $region110: #{tpu_custom_call.1} parent=63 // pred_check_branch
          %837 = sbr.rel (%p835) target = $region112
        $region111: #{tpu_custom_call.1} parent=63 // pred_region
          %s838 = sand.u32 %s43, 1
          %s839 = scalar_lea.sflag [#allocation11], %s838
          %s840 = sand.u32 %s339, 1
          %s841 = scalar_lea.vmem [#allocation10], %s840
          %843 = vsyncadd %s839, 0
          %s844 = scalar_lea.hbm %s12, %s43
          %s846 = sshll.u32 %s844, 4
          %s847 = int_to_ptr.hbm [resolvable:$true] %s846
          %s848 = sshll.u32 %s841, 4
          %s849 = int_to_ptr.vmem [resolvable:$true] %s848
          %851 = dma.hbm_to_vmem [thread:$0]  %s847, 16, %s849, %s839
        $region112: #{tpu_custom_call.1} parent=63 // pred_fallthru
          _
      $region64: #{tpu_custom_call.1} parent=5 // pred_fallthru
        _
      %p852 = scmp.le.s32.totalorder 1, %s43
      %p853 = scmp.lt.s32.totalorder %s43, 3
      %p854 = pnand %p852, %p853
      %p855 = pneg %p854
      // Predicated region
      $region113: #{tpu_custom_call.1} parent=5 // pred_check
        _
      $region114: #{tpu_custom_call.1} parent=5 // pred_check_branch
        %857 = sbr.rel (%p854) target = $region116
      $region115: #{tpu_custom_call.1} parent=5 // pred_region
        %s858 = ssub.s32 %s43, 1
        %s859 = sand.u32 %s238, 1
        %s860 = scalar_lea.sflag [#allocation5], %s859
        %s861 = sand.u32 %s238, 1
        %s862 = scalar_lea.vmem [#allocation4], %s861
        // Predicated region
        $region117: #{tpu_custom_call.1} parent=115 // pred_check
          %p863 = pneg %p251
        $region118: #{tpu_custom_call.1} parent=115 // pred_check_branch
          %865 = sbr.rel (%p863) target = $region120
        $region119: #{tpu_custom_call.1} parent=115 // pred_region
          %867 = dma.done %s860, 16
        $region120: #{tpu_custom_call.1} parent=115 // pred_fallthru
          _
        %s868 = sand.u32 %s48, 1
        %s869 = scalar_lea.sflag [#allocation8], %s868
        %s870 = sand.u32 %s290, 1
        %s871 = scalar_lea.vmem [#allocation7], %s870
        // Predicated region
        $region121: #{tpu_custom_call.1} parent=115 // pred_check
          %p872 = pneg %p303
        $region122: #{tpu_custom_call.1} parent=115 // pred_check_branch
          %874 = sbr.rel (%p872) target = $region124
        $region123: #{tpu_custom_call.1} parent=115 // pred_region
          %876 = dma.done %s869, 16
        $region124: #{tpu_custom_call.1} parent=115 // pred_fallthru
          _
        %s877 = sand.u32 %s48, 1
        %s878 = scalar_lea.sflag [#allocation8], %s877
        %s879 = sand.u32 %s316, 1
        %s880 = scalar_lea.vmem [#allocation9], %s879
        // Predicated region
        $region125: #{tpu_custom_call.1} parent=115 // pred_check
          %p881 = pneg %p329
        $region126: #{tpu_custom_call.1} parent=115 // pred_check_branch
          %883 = sbr.rel (%p881) target = $region128
        $region127: #{tpu_custom_call.1} parent=115 // pred_region
          %885 = dma.done %s878, 16
        $region128: #{tpu_custom_call.1} parent=115 // pred_fallthru
          _
        %s886 = sand.u32 %s48, 1
        %s887 = scalar_lea.sflag [#allocation11], %s886
        %s888 = sand.u32 %s342, 1
        %s889 = scalar_lea.vmem [#allocation10], %s888
        // Predicated region
        $region129: #{tpu_custom_call.1} parent=115 // pred_check
          %p890 = pneg %p355
        $region130: #{tpu_custom_call.1} parent=115 // pred_check_branch
          %892 = sbr.rel (%p890) target = $region132
        $region131: #{tpu_custom_call.1} parent=115 // pred_region
          %894 = dma.done %s887, 16
        $region132: #{tpu_custom_call.1} parent=115 // pred_fallthru
          _
        // Predicated region
        $region133: #{tpu_custom_call.1} parent=115 // pred_check
          %p895 = pneg %p376
        $region134: #{tpu_custom_call.1} parent=115 // pred_check_branch
          %897 = sbr.rel (%p895) target = $region136
        $region135: #{tpu_custom_call.1} parent=115 // pred_region
          %899 = dma.done [#allocation11], 32
        $region136: #{tpu_custom_call.1} parent=115 // pred_fallthru
          _
        // Predicated region
        $region137: #{tpu_custom_call.1} parent=115 // pred_check
          %p900 = pneg %p397
        $region138: #{tpu_custom_call.1} parent=115 // pred_check_branch
          %902 = sbr.rel (%p900) target = $region140
        $region139: #{tpu_custom_call.1} parent=115 // pred_region
          %904 = dma.done [#allocation14], 16
        $region140: #{tpu_custom_call.1} parent=115 // pred_fallthru
          _
        // Predicated region
        $region141: #{tpu_custom_call.1} parent=115 // pred_check
          %p905 = pneg %p418
        $region142: #{tpu_custom_call.1} parent=115 // pred_check_branch
          %907 = sbr.rel (%p905) target = $region144
        $region143: #{tpu_custom_call.1} parent=115 // pred_region
          %909 = dma.done [#allocation14], 16
        $region144: #{tpu_custom_call.1} parent=115 // pred_fallthru
          _
        // Predicated region
        $region145: #{tpu_custom_call.1} parent=115 // pred_check
          %p910 = pneg %p439
        $region146: #{tpu_custom_call.1} parent=115 // pred_check_branch
          %912 = sbr.rel (%p910) target = $region148
        $region147: #{tpu_custom_call.1} parent=115 // pred_region
          %914 = dma.done [#allocation17], 16
        $region148: #{tpu_custom_call.1} parent=115 // pred_fallthru
          _
        // Predicated region
        $region149: #{tpu_custom_call.1} parent=115 // pred_check
          %p915 = pneg %p460
        $region150: #{tpu_custom_call.1} parent=115 // pred_check_branch
          %917 = sbr.rel (%p915) target = $region152
        $region151: #{tpu_custom_call.1} parent=115 // pred_region
          %919 = dma.done [#allocation17], 16
        $region152: #{tpu_custom_call.1} parent=115 // pred_fallthru
          _
        %p920 = scmp.lt.s32.totalorder %s48, 1
        %s921 = scalar_select %p920, %s48, 1
        %s922 = smul.addr %s921, 4
        %s923 = smul.addr %s922, 4
        %s924 = scalar_lea.vmem %s1, %s923
        %p925 = pneg %p69
        %p926 = pneg %p66
        %p927 = scmp.lt.s32.totalorder %s48, 1
        %s928 = scalar_select %p927, %s48, 1
        %s929 = scalar_lea.vmem %s2, %s928
        %p930 = pneg %p95
        %p931 = pneg %p92
        %p932 = scmp.lt.s32.totalorder %s48, 1
        %s933 = scalar_select %p932, %s48, 1
        %s934 = smul.addr %s933, 4
        %s935 = smul.addr %s934, 4
        %s936 = scalar_lea.vmem %s3, %s935
        %p937 = pneg %p121
        %p938 = pneg %p118
        %p939 = scmp.lt.s32.totalorder %s48, 1
        %s940 = scalar_select %p939, %s48, 1
        %s941 = scalar_lea.vmem %s4, %s940
        %p942 = pneg %p147
        %p943 = pneg %p144
        %p944 = scmp.lt.s32.totalorder %s48, 1
        %s945 = scalar_select %p944, %s48, 1
        %s946 = scalar_lea.vmem %s5, %s945
        %p947 = pneg %p173
        %p948 = pneg %p170
        %p949 = scmp.lt.s32.totalorder %s48, 1
        %s950 = scalar_select %p949, %s48, 1
        %s951 = scalar_lea.vmem %s6, %s950
        %p952 = pneg %p199
        %p953 = pneg %p196
        %p954 = scmp.lt.s32.totalorder %s48, 1
        %s955 = scalar_select %p954, %s48, 1
        %s956 = smul.addr %s955, 4
        %s957 = smul.addr %s956, 4
        %s958 = scalar_lea.vmem %s7, %s957
        %p959 = pneg %p225
        %p960 = pneg %p222
        %s961 = sand.u32 %s238, 1
        %s962 = scalar_lea.sflag [#allocation5], %s961
        %s963 = sand.u32 %s238, 1
        %s964 = scalar_lea.vmem [#allocation4], %s963
        %p965 = pneg %p251
        %p966 = pneg %p248
        %p967 = scmp.lt.s32.totalorder %s48, 1
        %s968 = scalar_select %p967, %s48, 1
        %s969 = smul.addr %s968, 16
        %s970 = smul.addr %s969, 4
        %s971 = scalar_lea.vmem %s9, %s970
        %p972 = pneg %p277
        %p973 = pneg %p274
        %s974 = sand.u32 %s48, 1
        %s975 = scalar_lea.sflag [#allocation8], %s974
        %s976 = sand.u32 %s290, 1
        %s977 = scalar_lea.vmem [#allocation7], %s976
        %p978 = pneg %p303
        %p979 = pneg %p300
        %s980 = sand.u32 %s48, 1
        %s981 = scalar_lea.sflag [#allocation8], %s980
        %s982 = sand.u32 %s316, 1
        %s983 = scalar_lea.vmem [#allocation9], %s982
        %p984 = pneg %p329
        %p985 = pneg %p326
        %s986 = sand.u32 %s48, 1
        %s987 = scalar_lea.sflag [#allocation11], %s986
        %s988 = sand.u32 %s342, 1
        %s989 = scalar_lea.vmem [#allocation10], %s988
        %p990 = pneg %p355
        %p991 = pneg %p352
        %p992 = pneg %p376
        %p993 = pneg %p373
        %p994 = pneg %p397
        %p995 = pneg %p394
        %p996 = pneg %p418
        %p997 = pneg %p415
        %p998 = pneg %p439
        %p999 = pneg %p436
        %p1000 = pneg %p460
        %p1001 = pneg %p457
        %p1002 = pneg %p481
        %p1003 = pneg %p478
        %p1004 = pneg %p502
        %p1005 = pneg %p499
        %p1006 = pneg %p523
        %p1007 = pneg %p520
        %p1008 = pneg %p544
        %p1009 = pneg %p541
        %p1010 = pneg %p565
        %p1011 = pneg %p562
        %p1012 = pneg %p586
        %p1013 = pneg %p583
        %p1014 = pneg %p607
        %p1015 = pneg %p604
        %p1016 = pneg %p628
        %p1017 = pneg %p625
        %p1018 = scmp.lt.s32.totalorder %s48, 1
        %s1019 = scalar_select %p1018, %s48, 1
        %s1020 = smul.addr %s1019, 4
        %s1021 = smul.addr %s1020, 4
        %s1022 = scalar_lea.vmem %s1, %s1021
        %p1023 = scmp.lt.s32.totalorder %s48, 1
        %s1024 = scalar_select %p1023, %s48, 1
        %s1025 = scalar_lea.vmem %s2, %s1024
        %p1026 = scmp.lt.s32.totalorder %s48, 1
        %s1027 = scalar_select %p1026, %s48, 1
        %s1028 = smul.addr %s1027, 4
        %s1029 = smul.addr %s1028, 4
        %s1030 = scalar_lea.vmem %s3, %s1029
        %p1031 = scmp.lt.s32.totalorder %s48, 1
        %s1032 = scalar_select %p1031, %s48, 1
        %s1033 = scalar_lea.vmem %s4, %s1032
        %p1034 = scmp.lt.s32.totalorder %s48, 1
        %s1035 = scalar_select %p1034, %s48, 1
        %s1036 = scalar_lea.vmem %s5, %s1035
        %p1037 = scmp.lt.s32.totalorder %s48, 1
        %s1038 = scalar_select %p1037, %s48, 1
        %s1039 = scalar_lea.vmem %s6, %s1038
        %p1040 = scmp.lt.s32.totalorder %s48, 1
        %s1041 = scalar_select %p1040, %s48, 1
        %s1042 = smul.addr %s1041, 4
        %s1043 = smul.addr %s1042, 4
        %s1044 = scalar_lea.vmem %s7, %s1043
        %p1045 = scmp.lt.s32.totalorder %s48, 1
        %s1046 = scalar_select %p1045, %s48, 1
        %s1047 = smul.addr %s1046, 16
        %s1048 = smul.addr %s1047, 4
        %s1049 = scalar_lea.vmem %s9, %s1048
        %p1051 = scmp.eq.s32.totalorder %s48, 0
        // Predicated region
        $region153: #{tpu_custom_call.1} parent=115 // pred_check
          %p1052 = pneg %p1051
        $region154: #{tpu_custom_call.1} parent=115 // pred_check_branch
          %1054 = sbr.rel (%p1052) target = $region156
        $region155: #{tpu_custom_call.1} parent=115 // pred_region
          // Predicated region
          $region157: #{tpu_custom_call.1} parent=155 // pred_check
            _
          $region158: #{tpu_custom_call.1} parent=155 // pred_check_branch
            %1056 = sbr.rel (0) target = $region160
          $region159: #{tpu_custom_call.1} parent=155 // pred_region
            loop: start=0, step=1, limit=1
            $region161: #{tpu_custom_call.1} parent=159 // loop_pre_header
              _
            $region162: #{tpu_custom_call.1} parent=159 // loop_header
              %s1058 = sphi 0, %s1062
              %p1059 = scmp.ge.s32.totalorder %s1058, 1
              %s1063 = sphi %s0, %s0
              %s1064 = sphi [#allocation2], [#allocation2]
            $region163: #{tpu_custom_call.1} parent=159 // loop_header_branch
              %1061 = sbr.rel (%p1059) target = $region167
            $region164: #{tpu_custom_call.1} parent=159 // loop_body
              %v1065 = vld [vmem:[%s1063] sm:$0xff]
              %1066 = vst [vmem:[%s1064] sm:$0xff] %v1065
              %v1067 = vld [vmem:[%s1063 + $0x8] sm:$0xff]
              %1068 = vst [vmem:[%s1064 + $0x8] sm:$0xff] %v1067
            $region165: #{tpu_custom_call.1} parent=159 // loop_footer
              %s1062 = sadd.s32 1, %s1058
            $region166: #{tpu_custom_call.1} parent=159 // loop_footer_branch
              %1057 = sbr.rel target = $region162
            $region167: #{tpu_custom_call.1} parent=159 // loop_exit
              _
          $region160: #{tpu_custom_call.1} parent=155 // pred_fallthru
            _
          // Predicated region
          $region168: #{tpu_custom_call.1} parent=155 // pred_check
            _
          $region169: #{tpu_custom_call.1} parent=155 // pred_check_branch
            %1070 = sbr.rel target = $region171
          $region170: #{tpu_custom_call.1} parent=155 // pred_region
            _
          $region171: #{tpu_custom_call.1} parent=155 // pred_fallthru
            _
          // Predicated region
          $region172: #{tpu_custom_call.1} parent=155 // pred_check
            _
          $region173: #{tpu_custom_call.1} parent=155 // pred_check_branch
            %1073 = sbr.rel (0) target = $region175
          $region174: #{tpu_custom_call.1} parent=155 // pred_region
            %1074 = vsyncadd [#allocation3], 256
          $region175: #{tpu_custom_call.1} parent=155 // pred_fallthru
            _
          %s1075 = smul.u32 16, 1
          %s1076 = sshll.u32 %s1075, 4
          %1077 = dma.done [#allocation3], %s1076
        $region156: #{tpu_custom_call.1} parent=115 // pred_fallthru
          _
        %v1078 = vld [vmem:[#allocation2] sm:$0xff]
        %v1079 = vld [vmem:[#allocation2 + $0x8] sm:$0xff]
        %v1080 = vpack.c.bf16 %v1079, %v1078
        %v1081 = vld [vmem:[%s1022] sm:$0xf]
        %v1082 = vld [vmem:[%s1022 + $0x4] sm:$0xf]
        %v1083 = vld [vmem:[%s1022 + $0x8] sm:$0xf]
        %v1084 = vld [vmem:[%s1022 + $0xc] sm:$0xf]
        %v1085 = vld [vmem:[%s1025] sm:$0x1]
        %v1087 = vperm.slane %v1085, 0
        %v1093 = vunpack.c.l.b16 %v1081
        %v1094 = vunpack.c.l.b16 %v1082
        %v1095 = vunpack.c.l.b16 %v1083
        %v1096 = vunpack.c.l.b16 %v1084
        %v1097 = vpack.c.b16 %v1094, %v1093
        %v1098 = vpack.c.b16 %v1096, %v1095
        %vm1101 = vcmask 261120
        %v1103 = vsel %vm1101, %v1080, 0
        %1105 = vmatpush.bf16.msra.mxu0 0
        %1106 = vmatpush.bf16.msra.mxu0 0
        %1107 = vmatpush.bf16.msra.mxu0 0
        %1108 = vmatpush.bf16.msra.mxu0 0
        %1109 = vmatpush.bf16.msra.mxu0 0
        %1110 = vmatpush.bf16.msra.mxu0 0
        %1111 = vmatpush.bf16.msra.mxu0 %v1098
        %1112 = vmatpush.bf16.msra.mxu0 %v1097
        %1113 = vmatmul.bf16.gmra.mxu0 %v1103
        %v1114 = vpop.f32.mrf.mxu0
        %v1115 = vadd.f32 %v1087, %v1114
        %v1116 = vpop.f32.mrf.mxu0
        %v1117 = vadd.f32 %v1087, %v1116
        %1118 = vdwg.mxu0
        %v1119 = vpack.c.bf16 %v1115, %v1115
        %v1120 = vpack.c.bf16 %v1117, %v1117
        %v1122 = vunpack.c.l.b16 %v1119
        %v1123 = vpack.c.b16 %v1122, %v1122
        %1124 = vrot.lane.b32.xlu0 %v1123, 96
        %v1125 = vpop.permute.xlu0 %1124
        %vm1126 = vcmask 64512
        %v1128 = vsel %vm1126, %v1119, 0
        %v1131 = vsel %vm1126, %v1125, 0
        %1133 = vmatpush.bf16.xpose.msra.mxu0 0
        %1134 = vmatpush.bf16.xpose.msra.mxu0 0
        %1135 = vmatpush.bf16.xpose.msra.mxu0 0
        %1136 = vmatpush.bf16.xpose.msra.mxu0 0
        %1137 = vmatpush.bf16.xpose.msra.mxu0 0
        %1138 = vmatpush.bf16.xpose.msra.mxu0 0
        %1139 = vmatpush.bf16.xpose.msra.mxu0 0
        %1140 = vmatpush.bf16.xpose.msra.mxu0 %v1131
        %1141 = vmatmul.bf16.gmra.mxu0 %v1128
        %v1142 = vpop.f32.mrf.mxu0
        %v1143 = vadd.f32 0.0, %v1142
        %v1144 = vpop.f32.mrf.mxu0
        %1145 = vdwg.mxu0
        %v1147 = vunpack.c.l.b16 %v1120
        %v1148 = vpack.c.b16 %v1147, %v1147
        %1149 = vrot.lane.b32.xlu0 %v1148, 96
        %v1150 = vpop.permute.xlu0 %1149
        %v1152 = vsel %vm1126, %v1120, 0
        %v1155 = vsel %vm1126, %v1150, 0
        %1157 = vmatpush.bf16.xpose.msra.mxu0 0
        %1158 = vmatpush.bf16.xpose.msra.mxu0 0
        %1159 = vmatpush.bf16.xpose.msra.mxu0 0
        %1160 = vmatpush.bf16.xpose.msra.mxu0 0
        %1161 = vmatpush.bf16.xpose.msra.mxu0 0
        %1162 = vmatpush.bf16.xpose.msra.mxu0 0
        %1163 = vmatpush.bf16.xpose.msra.mxu0 0
        %1164 = vmatpush.bf16.xpose.msra.mxu0 %v1155
        %1165 = vmatmul.bf16.gmra.mxu0 %v1152
        %v1166 = vpop.f32.mrf.mxu0
        %v1167 = vadd.f32 0.0, %v1166
        %v1168 = vpop.f32.mrf.mxu0
        %1169 = vdwg.mxu0
        %v1170 = vsel %vm1126, %v1143, -inf
        %1171 = vmax.xlane.f32.xlu0 %v1170
        %v1172 = vpop.xlane.xlu0 %1171
        %v1173 = vsel %vm1126, %v1167, -inf
        %1174 = vmax.xlane.f32.xlu0 %v1173
        %v1175 = vpop.xlane.xlu0 %1174
        %v1176 = vsub.f32 %v1143, %v1172
        %v1177 = vsub.f32 %v1167, %v1175
        %v1178 = vmul.f32 %v1176, 1.442695
        %v1179 = vpow.pop %v1178
        %v1180 = vmul.f32 %v1177, 1.442695
        %v1181 = vpow.pop %v1180
        %v1182 = vsel %vm1126, %v1179, 0.0
        %1183 = vadd.xlane.f32.xlu0 %v1182
        %v1184 = vpop.xlane.xlu0 %1183
        %v1185 = vsel %vm1126, %v1181, 0.0
        %1186 = vadd.xlane.f32.xlu0 %v1185
        %v1187 = vpop.xlane.xlu0 %1186
        %v1188 = vrcp.pop %v1184
        %v1189 = vrcp.pop %v1187
        %v1190 = vmul.f32 %v1179, %v1188
        %v1191 = vmul.f32 %v1181, %v1189
        %v1192 = vpack.c.bf16 %v1190, %v1190
        %v1193 = vpack.c.bf16 %v1191, %v1191
        %1194 = vrot.lane.b32.xlu0 %v1123, 64
        %v1195 = vpop.permute.xlu0 %1194
        %v1197 = vsel %vm1126, %v1192, 0
        %vm1199 = vcmask 1043456
        %v1201 = vsel %vm1199, %v1195, 0
        %1203 = vmatpush.bf16.msra.mxu0 0
        %1204 = vmatpush.bf16.msra.mxu0 0
        %1205 = vmatpush.bf16.msra.mxu0 0
        %1206 = vmatpush.bf16.msra.mxu0 0
        %1207 = vmatpush.bf16.msra.mxu0 0
        %1208 = vmatpush.bf16.msra.mxu0 0
        %1209 = vmatpush.bf16.msra.mxu0 0
        %1210 = vmatpush.bf16.msra.mxu0 %v1201
        %1211 = vmatmul.bf16.gmra.mxu0 %v1197
        %v1212 = vpop.f32.mrf.mxu0
        %v1213 = vadd.f32 0.0, %v1212
        %v1214 = vpop.f32.mrf.mxu0
        %1215 = vdwg.mxu0
        %1216 = vrot.lane.b32.xlu0 %v1148, 64
        %v1217 = vpop.permute.xlu0 %1216
        %v1219 = vsel %vm1126, %v1193, 0
        %v1222 = vsel %vm1199, %v1217, 0
        %1224 = vmatpush.bf16.msra.mxu0 0
        %1225 = vmatpush.bf16.msra.mxu0 0
        %1226 = vmatpush.bf16.msra.mxu0 0
        %1227 = vmatpush.bf16.msra.mxu0 0
        %1228 = vmatpush.bf16.msra.mxu0 0
        %1229 = vmatpush.bf16.msra.mxu0 0
        %1230 = vmatpush.bf16.msra.mxu0 0
        %1231 = vmatpush.bf16.msra.mxu0 %v1222
        %1232 = vmatmul.bf16.gmra.mxu0 %v1219
        %v1233 = vpop.f32.mrf.mxu0
        %v1234 = vadd.f32 0.0, %v1233
        %v1235 = vpop.f32.mrf.mxu0
        %1236 = vdwg.mxu0
        %1237 = vrot.lane.b32.xlu0 %v1123, 120
        %v1238 = vpop.permute.xlu0 %1237
        %1239 = vrot.lane.b32.xlu0 %v1123, 88
        %v1240 = vpop.permute.xlu0 %1239
        %v1242 = vsel %vm1126, %v1238, 0
        %v1245 = vsel %vm1126, %v1240, 0
        %1247 = vmatpush.bf16.xpose.msra.mxu0 0
        %1248 = vmatpush.bf16.xpose.msra.mxu0 0
        %1249 = vmatpush.bf16.xpose.msra.mxu0 0
        %1250 = vmatpush.bf16.xpose.msra.mxu0 0
        %1251 = vmatpush.bf16.xpose.msra.mxu0 0
        %1252 = vmatpush.bf16.xpose.msra.mxu0 0
        %1253 = vmatpush.bf16.xpose.msra.mxu0 0
        %1254 = vmatpush.bf16.xpose.msra.mxu0 %v1245
        %1255 = vmatmul.bf16.gmra.mxu0 %v1242
        %v1256 = vpop.f32.mrf.mxu0
        %v1257 = vadd.f32 0.0, %v1256
        %v1258 = vpop.f32.mrf.mxu0
        %1259 = vdwg.mxu0
        %1260 = vrot.lane.b32.xlu0 %v1148, 120
        %v1261 = vpop.permute.xlu0 %1260
        %1262 = vrot.lane.b32.xlu0 %v1148, 88
        %v1263 = vpop.permute.xlu0 %1262
        %v1265 = vsel %vm1126, %v1261, 0
        %v1268 = vsel %vm1126, %v1263, 0
        %1270 = vmatpush.bf16.xpose.msra.mxu0 0
        %1271 = vmatpush.bf16.xpose.msra.mxu0 0
        %1272 = vmatpush.bf16.xpose.msra.mxu0 0
        %1273 = vmatpush.bf16.xpose.msra.mxu0 0
        %1274 = vmatpush.bf16.xpose.msra.mxu0 0
        %1275 = vmatpush.bf16.xpose.msra.mxu0 0
        %1276 = vmatpush.bf16.xpose.msra.mxu0 0
        %1277 = vmatpush.bf16.xpose.msra.mxu0 %v1268
        %1278 = vmatmul.bf16.gmra.mxu0 %v1265
        %v1279 = vpop.f32.mrf.mxu0
        %v1280 = vadd.f32 0.0, %v1279
        %v1281 = vpop.f32.mrf.mxu0
        %1282 = vdwg.mxu0
        %v1283 = vsel %vm1126, %v1257, -inf
        %1284 = vmax.xlane.f32.xlu0 %v1283
        %v1285 = vpop.xlane.xlu0 %1284
        %v1286 = vsel %vm1126, %v1280, -inf
        %1287 = vmax.xlane.f32.xlu0 %v1286
        %v1288 = vpop.xlane.xlu0 %1287
        %v1289 = vsub.f32 %v1257, %v1285
        %v1290 = vsub.f32 %v1280, %v1288
        %v1291 = vmul.f32 %v1289, 1.442695
        %v1292 = vpow.pop %v1291
        %v1293 = vmul.f32 %v1290, 1.442695
        %v1294 = vpow.pop %v1293
        %v1295 = vsel %vm1126, %v1292, 0.0
        %1296 = vadd.xlane.f32.xlu0 %v1295
        %v1297 = vpop.xlane.xlu0 %1296
        %v1298 = vsel %vm1126, %v1294, 0.0
        %1299 = vadd.xlane.f32.xlu0 %v1298
        %v1300 = vpop.xlane.xlu0 %1299
        %v1301 = vrcp.pop %v1297
        %v1302 = vrcp.pop %v1300
        %v1303 = vmul.f32 %v1292, %v1301
        %v1304 = vmul.f32 %v1294, %v1302
        %v1305 = vpack.c.bf16 %v1303, %v1303
        %v1306 = vpack.c.bf16 %v1304, %v1304
        %1307 = vrot.lane.b32.xlu0 %v1123, 56
        %v1308 = vpop.permute.xlu0 %1307
        %v1310 = vsel %vm1126, %v1305, 0
        %v1313 = vsel %vm1199, %v1308, 0
        %1315 = vmatpush.bf16.msra.mxu0 0
        %1316 = vmatpush.bf16.msra.mxu0 0
        %1317 = vmatpush.bf16.msra.mxu0 0
        %1318 = vmatpush.bf16.msra.mxu0 0
        %1319 = vmatpush.bf16.msra.mxu0 0
        %1320 = vmatpush.bf16.msra.mxu0 0
        %1321 = vmatpush.bf16.msra.mxu0 0
        %1322 = vmatpush.bf16.msra.mxu0 %v1313
        %1323 = vmatmul.bf16.gmra.mxu0 %v1310
        %v1324 = vpop.f32.mrf.mxu0
        %v1325 = vadd.f32 0.0, %v1324
        %v1326 = vpop.f32.mrf.mxu0
        %1327 = vdwg.mxu0
        %1328 = vrot.lane.b32.xlu0 %v1148, 56
        %v1329 = vpop.permute.xlu0 %1328
        %v1331 = vsel %vm1126, %v1306, 0
        %v1334 = vsel %vm1199, %v1329, 0
        %1336 = vmatpush.bf16.msra.mxu0 0
        %1337 = vmatpush.bf16.msra.mxu0 0
        %1338 = vmatpush.bf16.msra.mxu0 0
        %1339 = vmatpush.bf16.msra.mxu0 0
        %1340 = vmatpush.bf16.msra.mxu0 0
        %1341 = vmatpush.bf16.msra.mxu0 0
        %1342 = vmatpush.bf16.msra.mxu0 0
        %1343 = vmatpush.bf16.msra.mxu0 %v1334
        %1344 = vmatmul.bf16.gmra.mxu0 %v1331
        %v1345 = vpop.f32.mrf.mxu0
        %v1346 = vadd.f32 0.0, %v1345
        %v1347 = vpop.f32.mrf.mxu0
        %1348 = vdwg.mxu0
        %1349 = vrot.lane.b32.xlu0 %v1123, 112
        %v1350 = vpop.permute.xlu0 %1349
        %1351 = vrot.lane.b32.xlu0 %v1123, 80
        %v1352 = vpop.permute.xlu0 %1351
        %v1354 = vsel %vm1126, %v1350, 0
        %v1357 = vsel %vm1126, %v1352, 0
        %1359 = vmatpush.bf16.xpose.msra.mxu0 0
        %1360 = vmatpush.bf16.xpose.msra.mxu0 0
        %1361 = vmatpush.bf16.xpose.msra.mxu0 0
        %1362 = vmatpush.bf16.xpose.msra.mxu0 0
        %1363 = vmatpush.bf16.xpose.msra.mxu0 0
        %1364 = vmatpush.bf16.xpose.msra.mxu0 0
        %1365 = vmatpush.bf16.xpose.msra.mxu0 0
        %1366 = vmatpush.bf16.xpose.msra.mxu0 %v1357
        %1367 = vmatmul.bf16.gmra.mxu0 %v1354
        %v1368 = vpop.f32.mrf.mxu0
        %v1369 = vadd.f32 0.0, %v1368
        %v1370 = vpop.f32.mrf.mxu0
        %1371 = vdwg.mxu0
        %1372 = vrot.lane.b32.xlu0 %v1148, 112
        %v1373 = vpop.permute.xlu0 %1372
        %1374 = vrot.lane.b32.xlu0 %v1148, 80
        %v1375 = vpop.permute.xlu0 %1374
        %v1377 = vsel %vm1126, %v1373, 0
        %v1380 = vsel %vm1126, %v1375, 0
        %1382 = vmatpush.bf16.xpose.msra.mxu0 0
        %1383 = vmatpush.bf16.xpose.msra.mxu0 0
        %1384 = vmatpush.bf16.xpose.msra.mxu0 0
        %1385 = vmatpush.bf16.xpose.msra.mxu0 0
        %1386 = vmatpush.bf16.xpose.msra.mxu0 0
        %1387 = vmatpush.bf16.xpose.msra.mxu0 0
        %1388 = vmatpush.bf16.xpose.msra.mxu0 0
        %1389 = vmatpush.bf16.xpose.msra.mxu0 %v1380
        %1390 = vmatmul.bf16.gmra.mxu0 %v1377
        %v1391 = vpop.f32.mrf.mxu0
        %v1392 = vadd.f32 0.0, %v1391
        %v1393 = vpop.f32.mrf.mxu0
        %1394 = vdwg.mxu0
        %v1395 = vsel %vm1126, %v1369, -inf
        %1396 = vmax.xlane.f32.xlu0 %v1395
        %v1397 = vpop.xlane.xlu0 %1396
        %v1398 = vsel %vm1126, %v1392, -inf
        %1399 = vmax.xlane.f32.xlu0 %v1398
        %v1400 = vpop.xlane.xlu0 %1399
        %v1401 = vsub.f32 %v1369, %v1397
        %v1402 = vsub.f32 %v1392, %v1400
        %v1403 = vmul.f32 %v1401, 1.442695
        %v1404 = vpow.pop %v1403
        %v1405 = vmul.f32 %v1402, 1.442695
        %v1406 = vpow.pop %v1405
        %v1407 = vsel %vm1126, %v1404, 0.0
        %1408 = vadd.xlane.f32.xlu0 %v1407
        %v1409 = vpop.xlane.xlu0 %1408
        %v1410 = vsel %vm1126, %v1406, 0.0
        %1411 = vadd.xlane.f32.xlu0 %v1410
        %v1412 = vpop.xlane.xlu0 %1411
        %v1413 = vrcp.pop %v1409
        %v1414 = vrcp.pop %v1412
        %v1415 = vmul.f32 %v1404, %v1413
        %v1416 = vmul.f32 %v1406, %v1414
        %v1417 = vpack.c.bf16 %v1415, %v1415
        %v1418 = vpack.c.bf16 %v1416, %v1416
        %1419 = vrot.lane.b32.xlu0 %v1123, 48
        %v1420 = vpop.permute.xlu0 %1419
        %v1422 = vsel %vm1126, %v1417, 0
        %v1425 = vsel %vm1199, %v1420, 0
        %1427 = vmatpush.bf16.msra.mxu0 0
        %1428 = vmatpush.bf16.msra.mxu0 0
        %1429 = vmatpush.bf16.msra.mxu0 0
        %1430 = vmatpush.bf16.msra.mxu0 0
        %1431 = vmatpush.bf16.msra.mxu0 0
        %1432 = vmatpush.bf16.msra.mxu0 0
        %1433 = vmatpush.bf16.msra.mxu0 0
        %1434 = vmatpush.bf16.msra.mxu0 %v1425
        %1435 = vmatmul.bf16.gmra.mxu0 %v1422
        %v1436 = vpop.f32.mrf.mxu0
        %v1437 = vadd.f32 0.0, %v1436
        %v1438 = vpop.f32.mrf.mxu0
        %1439 = vdwg.mxu0
        %1440 = vrot.lane.b32.xlu0 %v1148, 48
        %v1441 = vpop.permute.xlu0 %1440
        %v1443 = vsel %vm1126, %v1418, 0
        %v1446 = vsel %vm1199, %v1441, 0
        %1448 = vmatpush.bf16.msra.mxu0 0
        %1449 = vmatpush.bf16.msra.mxu0 0
        %1450 = vmatpush.bf16.msra.mxu0 0
        %1451 = vmatpush.bf16.msra.mxu0 0
        %1452 = vmatpush.bf16.msra.mxu0 0
        %1453 = vmatpush.bf16.msra.mxu0 0
        %1454 = vmatpush.bf16.msra.mxu0 0
        %1455 = vmatpush.bf16.msra.mxu0 %v1446
        %1456 = vmatmul.bf16.gmra.mxu0 %v1443
        %v1457 = vpop.f32.mrf.mxu0
        %v1458 = vadd.f32 0.0, %v1457
        %v1459 = vpop.f32.mrf.mxu0
        %1460 = vdwg.mxu0
        %1461 = vrot.lane.b32.xlu0 %v1123, 104
        %v1462 = vpop.permute.xlu0 %1461
        %1463 = vrot.lane.b32.xlu0 %v1123, 72
        %v1464 = vpop.permute.xlu0 %1463
        %v1466 = vsel %vm1126, %v1462, 0
        %v1469 = vsel %vm1126, %v1464, 0
        %1471 = vmatpush.bf16.xpose.msra.mxu0 0
        %1472 = vmatpush.bf16.xpose.msra.mxu0 0
        %1473 = vmatpush.bf16.xpose.msra.mxu0 0
        %1474 = vmatpush.bf16.xpose.msra.mxu0 0
        %1475 = vmatpush.bf16.xpose.msra.mxu0 0
        %1476 = vmatpush.bf16.xpose.msra.mxu0 0
        %1477 = vmatpush.bf16.xpose.msra.mxu0 0
        %1478 = vmatpush.bf16.xpose.msra.mxu0 %v1469
        %1479 = vmatmul.bf16.gmra.mxu0 %v1466
        %v1480 = vpop.f32.mrf.mxu0
        %v1481 = vadd.f32 0.0, %v1480
        %v1482 = vpop.f32.mrf.mxu0
        %1483 = vdwg.mxu0
        %1484 = vrot.lane.b32.xlu0 %v1148, 104
        %v1485 = vpop.permute.xlu0 %1484
        %1486 = vrot.lane.b32.xlu0 %v1148, 72
        %v1487 = vpop.permute.xlu0 %1486
        %v1489 = vsel %vm1126, %v1485, 0
        %v1492 = vsel %vm1126, %v1487, 0
        %1494 = vmatpush.bf16.xpose.msra.mxu0 0
        %1495 = vmatpush.bf16.xpose.msra.mxu0 0
        %1496 = vmatpush.bf16.xpose.msra.mxu0 0
        %1497 = vmatpush.bf16.xpose.msra.mxu0 0
        %1498 = vmatpush.bf16.xpose.msra.mxu0 0
        %1499 = vmatpush.bf16.xpose.msra.mxu0 0
        %1500 = vmatpush.bf16.xpose.msra.mxu0 0
        %1501 = vmatpush.bf16.xpose.msra.mxu0 %v1492
        %1502 = vmatmul.bf16.gmra.mxu0 %v1489
        %v1503 = vpop.f32.mrf.mxu0
        %v1504 = vadd.f32 0.0, %v1503
        %v1505 = vpop.f32.mrf.mxu0
        %1506 = vdwg.mxu0
        %v1507 = vsel %vm1126, %v1481, -inf
        %1508 = vmax.xlane.f32.xlu0 %v1507
        %v1509 = vpop.xlane.xlu0 %1508
        %v1510 = vsel %vm1126, %v1504, -inf
        %1511 = vmax.xlane.f32.xlu0 %v1510
        %v1512 = vpop.xlane.xlu0 %1511
        %v1513 = vsub.f32 %v1481, %v1509
        %v1514 = vsub.f32 %v1504, %v1512
        %v1515 = vmul.f32 %v1513, 1.442695
        %v1516 = vpow.pop %v1515
        %v1517 = vmul.f32 %v1514, 1.442695
        %v1518 = vpow.pop %v1517
        %v1519 = vsel %vm1126, %v1516, 0.0
        %1520 = vadd.xlane.f32.xlu0 %v1519
        %v1521 = vpop.xlane.xlu0 %1520
        %v1522 = vsel %vm1126, %v1518, 0.0
        %1523 = vadd.xlane.f32.xlu0 %v1522
        %v1524 = vpop.xlane.xlu0 %1523
        %v1525 = vrcp.pop %v1521
        %v1526 = vrcp.pop %v1524
        %v1527 = vmul.f32 %v1516, %v1525
        %v1528 = vmul.f32 %v1518, %v1526
        %v1529 = vpack.c.bf16 %v1527, %v1527
        %v1530 = vpack.c.bf16 %v1528, %v1528
        %1531 = vrot.lane.b32.xlu0 %v1123, 40
        %v1532 = vpop.permute.xlu0 %1531
        %v1534 = vsel %vm1126, %v1529, 0
        %v1537 = vsel %vm1199, %v1532, 0
        %1539 = vmatpush.bf16.msra.mxu0 0
        %1540 = vmatpush.bf16.msra.mxu0 0
        %1541 = vmatpush.bf16.msra.mxu0 0
        %1542 = vmatpush.bf16.msra.mxu0 0
        %1543 = vmatpush.bf16.msra.mxu0 0
        %1544 = vmatpush.bf16.msra.mxu0 0
        %1545 = vmatpush.bf16.msra.mxu0 0
        %1546 = vmatpush.bf16.msra.mxu0 %v1537
        %1547 = vmatmul.bf16.gmra.mxu0 %v1534
        %v1548 = vpop.f32.mrf.mxu0
        %v1549 = vadd.f32 0.0, %v1548
        %v1550 = vpop.f32.mrf.mxu0
        %1551 = vdwg.mxu0
        %1552 = vrot.lane.b32.xlu0 %v1148, 40
        %v1553 = vpop.permute.xlu0 %1552
        %v1555 = vsel %vm1126, %v1530, 0
        %v1558 = vsel %vm1199, %v1553, 0
        %1560 = vmatpush.bf16.msra.mxu0 0
        %1561 = vmatpush.bf16.msra.mxu0 0
        %1562 = vmatpush.bf16.msra.mxu0 0
        %1563 = vmatpush.bf16.msra.mxu0 0
        %1564 = vmatpush.bf16.msra.mxu0 0
        %1565 = vmatpush.bf16.msra.mxu0 0
        %1566 = vmatpush.bf16.msra.mxu0 0
        %1567 = vmatpush.bf16.msra.mxu0 %v1558
        %1568 = vmatmul.bf16.gmra.mxu0 %v1555
        %v1569 = vpop.f32.mrf.mxu0
        %v1570 = vadd.f32 0.0, %v1569
        %v1571 = vpop.f32.mrf.mxu0
        %1572 = vdwg.mxu0
        %1575 = vrot.lane.b32.xlu0 %v1325, 8
        %v1576 = vpop.permute.xlu0 %1575
        %1577 = vrot.lane.b32.xlu0 %v1346, 8
        %v1578 = vpop.permute.xlu0 %1577
        %1583 = vrot.lane.b32.xlu0 %v1437, 16
        %v1584 = vpop.permute.xlu0 %1583
        %1585 = vrot.lane.b32.xlu0 %v1458, 16
        %v1586 = vpop.permute.xlu0 %1585
        %1591 = vrot.lane.b32.xlu0 %v1549, 24
        %v1592 = vpop.permute.xlu0 %1591
        %1593 = vrot.lane.b32.xlu0 %v1570, 24
        %v1594 = vpop.permute.xlu0 %1593
        %v1597 = vsel %vm1126, %v1213, %v1576
        %v1598 = vsel %vm1126, %v1234, %v1578
        %vm1599 = vcmask 130048
        %v1600 = vsel %vm1599, %v1597, %v1584
        %v1601 = vsel %vm1599, %v1598, %v1586
        %vm1602 = vcmask 195584
        %v1603 = vsel %vm1602, %v1600, %v1592
        %v1604 = vsel %vm1602, %v1601, %v1594
        %v1605 = vpack.c.bf16 %v1604, %v1603
        %v1606 = vld [vmem:[%s1030] sm:$0xf]
        %v1607 = vld [vmem:[%s1030 + $0x4] sm:$0xf]
        %v1608 = vld [vmem:[%s1030 + $0x8] sm:$0xf]
        %v1609 = vld [vmem:[%s1030 + $0xc] sm:$0xf]
        %v1610 = vld [vmem:[%s1033] sm:$0x1]
        %v1612 = vperm.slane %v1610, 0
        %v1618 = vunpack.c.l.b16 %v1606
        %v1619 = vunpack.c.l.b16 %v1607
        %v1620 = vunpack.c.l.b16 %v1608
        %v1621 = vunpack.c.l.b16 %v1609
        %v1622 = vpack.c.b16 %v1619, %v1618
        %v1623 = vpack.c.b16 %v1621, %v1620
        %v1627 = vsel %vm1101, %v1605, 0
        %1629 = vmatpush.bf16.msra.mxu0 0
        %1630 = vmatpush.bf16.msra.mxu0 0
        %1631 = vmatpush.bf16.msra.mxu0 0
        %1632 = vmatpush.bf16.msra.mxu0 0
        %1633 = vmatpush.bf16.msra.mxu0 0
        %1634 = vmatpush.bf16.msra.mxu0 0
        %1635 = vmatpush.bf16.msra.mxu0 %v1623
        %1636 = vmatpush.bf16.msra.mxu0 %v1622
        %1637 = vmatmul.bf16.gmra.mxu0 %v1627
        %v1638 = vpop.f32.mrf.mxu0
        %v1639 = vadd.f32 %v1612, %v1638
        %v1640 = vpop.f32.mrf.mxu0
        %v1641 = vadd.f32 %v1612, %v1640
        %1642 = vdwg.mxu0
        %v1643 = vadd.f32 %v1078, %v1639
        %v1644 = vadd.f32 %v1079, %v1641
        %v1645 = vld [vmem:[%s1036] sm:$0x1]
        %v1646 = vld [vmem:[%s1039] sm:$0x1]
        %v1647 = vsel %vm1101, %v1643, 0.0
        %1648 = vadd.xlane.f32.xlu0 %v1647
        %v1649 = vpop.xlane.xlu0 %1648
        %v1650 = vsel %vm1101, %v1644, 0.0
        %1651 = vadd.xlane.f32.xlu0 %v1650
        %v1652 = vpop.xlane.xlu0 %1651
        %v1653 = vrcp.pop 32.0
        %v1654 = vmul.f32 32.0, %v1653
        %v1655 = vsub.f32 1.0, %v1654
        %v1656 = vmul.f32 %v1653, %v1655
        %v1657 = vadd.f32 %v1653, %v1656
        %vm1658 = vweird.f32 %v1653
        %v1659 = vsel %vm1658, %v1653, %v1657
        %v1660 = vmul.f32 %v1649, %v1659
        %v1661 = vmul.f32 %v1652, %v1659
        %v1662 = vsub.f32 %v1643, %v1660
        %v1663 = vsub.f32 %v1644, %v1661
        %v1664 = vmul.f32 %v1662, %v1662
        %v1665 = vmul.f32 %v1663, %v1663
        %v1666 = vsel %vm1101, %v1664, 0.0
        %1667 = vadd.xlane.f32.xlu0 %v1666
        %v1668 = vpop.xlane.xlu0 %1667
        %v1669 = vsel %vm1101, %v1665, 0.0
        %1670 = vadd.xlane.f32.xlu0 %v1669
        %v1671 = vpop.xlane.xlu0 %1670
        %v1672 = vmul.f32 %v1668, %v1659
        %v1673 = vmul.f32 %v1671, %v1659
        %v1674 = vadd.f32 %v1672, 1e-05
        %v1675 = vadd.f32 %v1673, 1e-05
        %v1676 = vrsqrt.pop %v1674
        %v1677 = vmul.f32 %v1676, %v1674
        %v1678 = vmul.f32 %v1677, %v1676
        %v1679 = vmul.f32 0.5, %v1678
        %v1680 = vsub.f32 1.5, %v1679
        %v1681 = vmul.f32 %v1676, %v1680
        %vm1682 = vweird.f32 %v1674
        %vm1683 = vweird.f32 %v1676
        %vm1684 = vmor %vm1682, %vm1683
        %v1685 = vsel %vm1684, %v1676, %v1681
        %v1686 = vrsqrt.pop %v1675
        %v1687 = vmul.f32 %v1686, %v1675
        %v1688 = vmul.f32 %v1687, %v1686
        %v1689 = vmul.f32 0.5, %v1688
        %v1690 = vsub.f32 1.5, %v1689
        %v1691 = vmul.f32 %v1686, %v1690
        %vm1692 = vweird.f32 %v1675
        %vm1693 = vweird.f32 %v1686
        %vm1694 = vmor %vm1692, %vm1693
        %v1695 = vsel %vm1694, %v1686, %v1691
        %v1696 = vmul.f32 %v1662, %v1685
        %v1697 = vmul.f32 %v1663, %v1695
        %v1699 = vperm.slane %v1645, 0
        %v1701 = vmul.f32 %v1696, %v1699
        %v1702 = vmul.f32 %v1697, %v1699
        %v1704 = vperm.slane %v1646, 0
        %v1706 = vadd.f32 %v1701, %v1704
        %v1707 = vadd.f32 %v1702, %v1704
        %v1708 = vpack.c.bf16 %v1707, %v1706
        %v1709 = vld [vmem:[%s1044] sm:$0xf]
        %v1710 = vld [vmem:[%s1044 + $0x4] sm:$0xf]
        %v1711 = vld [vmem:[%s1044 + $0x8] sm:$0xf]
        %v1712 = vld [vmem:[%s1044 + $0xc] sm:$0xf]
        %v1713 = vld [vmem:[%s862] sm:$0x1]
        %v1715 = vperm.slane %v1713, 0
        %v1721 = vunpack.c.l.b16 %v1709
        %v1722 = vunpack.c.l.b16 %v1710
        %v1723 = vunpack.c.l.b16 %v1711
        %v1724 = vunpack.c.l.b16 %v1712
        %v1725 = vpack.c.b16 %v1722, %v1721
        %v1726 = vpack.c.b16 %v1724, %v1723
        %v1730 = vsel %vm1101, %v1708, 0
        %1732 = vmatpush.bf16.msra.mxu0 0
        %1733 = vmatpush.bf16.msra.mxu0 0
        %1734 = vmatpush.bf16.msra.mxu0 0
        %1735 = vmatpush.bf16.msra.mxu0 0
        %1736 = vmatpush.bf16.msra.mxu0 0
        %1737 = vmatpush.bf16.msra.mxu0 0
        %1738 = vmatpush.bf16.msra.mxu0 %v1726
        %1739 = vmatpush.bf16.msra.mxu0 %v1725
        %1740 = vmatmul.bf16.gmra.mxu0 %v1730
        %v1741 = vpop.f32.mrf.mxu0
        %v1742 = vadd.f32 %v1715, %v1741
        %v1743 = vpop.f32.mrf.mxu0
        %v1744 = vadd.f32 %v1715, %v1743
        %1745 = vdwg.mxu0
        %v1746 = vmul.f32 %v1742, %v1742
        %v1747 = vmul.f32 %v1744, %v1744
        %v1748 = vmul.f32 %v1742, %v1746
        %v1749 = vmul.f32 %v1744, %v1747
        %v1750 = vmul.f32 %v1748, 0.044715
        %v1751 = vmul.f32 %v1749, 0.044715
        %v1752 = vadd.f32 %v1742, %v1750
        %v1753 = vadd.f32 %v1744, %v1751
        %v1754 = vmul.f32 %v1752, 0.7978846
        %v1755 = vmul.f32 %v1753, 0.7978846
        %v1756 = vtanh.pop %v1754
        %v1757 = vtanh.pop %v1755
        %v1758 = vadd.f32 %v1756, 1.0
        %v1759 = vadd.f32 %v1757, 1.0
        %v1760 = vmul.f32 %v1758, 0.5
        %v1761 = vmul.f32 %v1759, 0.5
        %v1762 = vmul.f32 %v1742, %v1760
        %v1763 = vmul.f32 %v1744, %v1761
        %v1764 = vpack.c.bf16 %v1763, %v1762
        %v1765 = vld [vmem:[%s1049] sm:$0xf]
        %v1766 = vld [vmem:[%s1049 + $0x4] sm:$0xf]
        %v1767 = vld [vmem:[%s1049 + $0x8] sm:$0xf]
        %v1768 = vld [vmem:[%s1049 + $0xc] sm:$0xf]
        %v1769 = vld [vmem:[%s1049 + $0x10] sm:$0xf]
        %v1770 = vld [vmem:[%s1049 + $0x14] sm:$0xf]
        %v1771 = vld [vmem:[%s1049 + $0x18] sm:$0xf]
        %v1772 = vld [vmem:[%s1049 + $0x1c] sm:$0xf]
        %v1773 = vld [vmem:[%s1049 + $0x20] sm:$0xf]
        %v1774 = vld [vmem:[%s1049 + $0x24] sm:$0xf]
        %v1775 = vld [vmem:[%s1049 + $0x28] sm:$0xf]
        %v1776 = vld [vmem:[%s1049 + $0x2c] sm:$0xf]
        %v1777 = vld [vmem:[%s1049 + $0x30] sm:$0xf]
        %v1778 = vld [vmem:[%s1049 + $0x34] sm:$0xf]
        %v1779 = vld [vmem:[%s1049 + $0x38] sm:$0xf]
        %v1780 = vld [vmem:[%s1049 + $0x3c] sm:$0xf]
        %v1781 = vld [vmem:[%s871] sm:$0x1]
        %v1783 = vperm.slane %v1781, 0
        %v1801 = vunpack.c.l.b16 %v1765
        %v1802 = vunpack.c.l.b16 %v1766
        %v1803 = vunpack.c.l.b16 %v1767
        %v1804 = vunpack.c.l.b16 %v1768
        %v1805 = vunpack.c.l.b16 %v1769
        %v1806 = vunpack.c.l.b16 %v1770
        %v1807 = vunpack.c.l.b16 %v1771
        %v1808 = vunpack.c.l.b16 %v1772
        %v1809 = vunpack.c.l.b16 %v1773
        %v1810 = vunpack.c.l.b16 %v1774
        %v1811 = vunpack.c.l.b16 %v1775
        %v1812 = vunpack.c.l.b16 %v1776
        %v1813 = vunpack.c.l.b16 %v1777
        %v1814 = vunpack.c.l.b16 %v1778
        %v1815 = vunpack.c.l.b16 %v1779
        %v1816 = vunpack.c.l.b16 %v1780
        %v1817 = vpack.c.b16 %v1802, %v1801
        %v1818 = vpack.c.b16 %v1804, %v1803
        %v1819 = vpack.c.b16 %v1806, %v1805
        %v1820 = vpack.c.b16 %v1808, %v1807
        %v1821 = vpack.c.b16 %v1810, %v1809
        %v1822 = vpack.c.b16 %v1812, %v1811
        %v1823 = vpack.c.b16 %v1814, %v1813
        %v1824 = vpack.c.b16 %v1816, %v1815
        %1833 = vmatpush.bf16.msra.mxu0 %v1824
        %1834 = vmatpush.bf16.msra.mxu0 %v1823
        %1835 = vmatpush.bf16.msra.mxu0 %v1822
        %1836 = vmatpush.bf16.msra.mxu0 %v1821
        %1837 = vmatpush.bf16.msra.mxu0 %v1820
        %1838 = vmatpush.bf16.msra.mxu0 %v1819
        %1839 = vmatpush.bf16.msra.mxu0 %v1818
        %1840 = vmatpush.bf16.msra.mxu0 %v1817
        %1841 = vmatmul.bf16.gmra.mxu0 %v1764
        %v1842 = vpop.f32.mrf.mxu0
        %v1843 = vadd.f32 %v1783, %v1842
        %v1844 = vpop.f32.mrf.mxu0
        %v1845 = vadd.f32 %v1783, %v1844
        %1846 = vdwg.mxu0
        %v1847 = vadd.f32 %v1706, %v1843
        %v1848 = vadd.f32 %v1707, %v1845
        %v1849 = vld [vmem:[%s880] sm:$0x1]
        %v1850 = vld [vmem:[%s889] sm:$0x1]
        %v1851 = vsel %vm1101, %v1847, 0.0
        %1852 = vadd.xlane.f32.xlu0 %v1851
        %v1853 = vpop.xlane.xlu0 %1852
        %v1854 = vsel %vm1101, %v1848, 0.0
        %1855 = vadd.xlane.f32.xlu0 %v1854
        %v1856 = vpop.xlane.xlu0 %1855
        %v1857 = vmul.f32 %v1853, %v1659
        %v1858 = vmul.f32 %v1856, %v1659
        %v1859 = vsub.f32 %v1847, %v1857
        %v1860 = vsub.f32 %v1848, %v1858
        %v1861 = vmul.f32 %v1859, %v1859
        %v1862 = vmul.f32 %v1860, %v1860
        %v1863 = vsel %vm1101, %v1861, 0.0
        %1864 = vadd.xlane.f32.xlu0 %v1863
        %v1865 = vpop.xlane.xlu0 %1864
        %v1866 = vsel %vm1101, %v1862, 0.0
        %1867 = vadd.xlane.f32.xlu0 %v1866
        %v1868 = vpop.xlane.xlu0 %1867
        %v1869 = vmul.f32 %v1865, %v1659
        %v1870 = vmul.f32 %v1868, %v1659
        %v1871 = vadd.f32 %v1869, 1e-05
        %v1872 = vadd.f32 %v1870, 1e-05
        %v1873 = vrsqrt.pop %v1871
        %v1874 = vmul.f32 %v1873, %v1871
        %v1875 = vmul.f32 %v1874, %v1873
        %v1876 = vmul.f32 0.5, %v1875
        %v1877 = vsub.f32 1.5, %v1876
        %v1878 = vmul.f32 %v1873, %v1877
        %vm1879 = vweird.f32 %v1871
        %vm1880 = vweird.f32 %v1873
        %vm1881 = vmor %vm1879, %vm1880
        %v1882 = vsel %vm1881, %v1873, %v1878
        %v1883 = vrsqrt.pop %v1872
        %v1884 = vmul.f32 %v1883, %v1872
        %v1885 = vmul.f32 %v1884, %v1883
        %v1886 = vmul.f32 0.5, %v1885
        %v1887 = vsub.f32 1.5, %v1886
        %v1888 = vmul.f32 %v1883, %v1887
        %vm1889 = vweird.f32 %v1872
        %vm1890 = vweird.f32 %v1883
        %vm1891 = vmor %vm1889, %vm1890
        %v1892 = vsel %vm1891, %v1883, %v1888
        %v1893 = vmul.f32 %v1859, %v1882
        %v1894 = vmul.f32 %v1860, %v1892
        %v1896 = vperm.slane %v1849, 0
        %v1898 = vmul.f32 %v1893, %v1896
        %v1899 = vmul.f32 %v1894, %v1896
        %v1901 = vperm.slane %v1850, 0
        %v1903 = vadd.f32 %v1898, %v1901
        %v1904 = vadd.f32 %v1899, %v1901
        %1905 = vst.msk [vmem:[#allocation2] sm:$0xff] %vm1101, %v1903
        %1906 = vst.msk [vmem:[#allocation2 + $0x8] sm:$0xff] %vm1101, %v1904
        %p1907 = scmp.eq.s32.totalorder %s48, 1
        // Predicated region
        $region176: #{tpu_custom_call.1} parent=115 // pred_check
          %p1908 = pneg %p1907
        $region177: #{tpu_custom_call.1} parent=115 // pred_check_branch
          %1910 = sbr.rel (%p1908) target = $region179
        $region178: #{tpu_custom_call.1} parent=115 // pred_region
          %v1911 = vld [vmem:[#allocation12] sm:$0x3]
          %v1912 = vld [vmem:[#allocation13] sm:$0x1]
          %v1913 = vld [vmem:[#allocation15] sm:$0x1]
          %vm1914 = vcmask 254976
          %v1915 = vsel %vm1914, %v1911, 0.0
          %1916 = vadd.xlane.f32.xlu0 %v1915
          %v1917 = vpop.xlane.xlu0 %1916
          %v1918 = vmul.f32 %v1917, %v1659
          %v1919 = vsub.f32 %v1911, %v1918
          %v1920 = vmul.f32 %v1919, %v1919
          %v1921 = vsel %vm1914, %v1920, 0.0
          %1922 = vadd.xlane.f32.xlu0 %v1921
          %v1923 = vpop.xlane.xlu0 %1922
          %v1924 = vmul.f32 %v1923, %v1659
          %v1925 = vadd.f32 %v1924, 1e-05
          %v1926 = vrsqrt.pop %v1925
          %v1927 = vmul.f32 %v1926, %v1925
          %v1928 = vmul.f32 %v1927, %v1926
          %v1929 = vmul.f32 0.5, %v1928
          %v1930 = vsub.f32 1.5, %v1929
          %v1931 = vmul.f32 %v1926, %v1930
          %vm1932 = vweird.f32 %v1925
          %vm1933 = vweird.f32 %v1926
          %vm1934 = vmor %vm1932, %vm1933
          %v1935 = vsel %vm1934, %v1926, %v1931
          %v1936 = vmul.f32 %v1919, %v1935
          %v1938 = vperm.slane %v1912, 0
          %v1940 = vmul.f32 %v1936, %v1938
          %v1942 = vperm.slane %v1913, 0
          %v1944 = vadd.f32 %v1940, %v1942
          %v1945 = vld [vmem:[#allocation16] sm:$0x1]
          %v1946 = vld [vmem:[#allocation18] sm:$0x1]
          %v1947 = vsel %vm1101, %v1903, 0.0
          %1948 = vadd.xlane.f32.xlu0 %v1947
          %v1949 = vpop.xlane.xlu0 %1948
          %v1950 = vsel %vm1101, %v1904, 0.0
          %1951 = vadd.xlane.f32.xlu0 %v1950
          %v1952 = vpop.xlane.xlu0 %1951
          %v1953 = vmul.f32 %v1949, %v1659
          %v1954 = vmul.f32 %v1952, %v1659
          %v1955 = vsub.f32 %v1903, %v1953
          %v1956 = vsub.f32 %v1904, %v1954
          %v1957 = vmul.f32 %v1955, %v1955
          %v1958 = vmul.f32 %v1956, %v1956
          %v1959 = vsel %vm1101, %v1957, 0.0
          %1960 = vadd.xlane.f32.xlu0 %v1959
          %v1961 = vpop.xlane.xlu0 %1960
          %v1962 = vsel %vm1101, %v1958, 0.0
          %1963 = vadd.xlane.f32.xlu0 %v1962
          %v1964 = vpop.xlane.xlu0 %1963
          %v1965 = vmul.f32 %v1961, %v1659
          %v1966 = vmul.f32 %v1964, %v1659
          %v1967 = vadd.f32 %v1965, 1e-05
          %v1968 = vadd.f32 %v1966, 1e-05
          %v1969 = vrsqrt.pop %v1967
          %v1970 = vmul.f32 %v1969, %v1967
          %v1971 = vmul.f32 %v1970, %v1969
          %v1972 = vmul.f32 0.5, %v1971
          %v1973 = vsub.f32 1.5, %v1972
          %v1974 = vmul.f32 %v1969, %v1973
          %vm1975 = vweird.f32 %v1967
          %vm1976 = vweird.f32 %v1969
          %vm1977 = vmor %vm1975, %vm1976
          %v1978 = vsel %vm1977, %v1969, %v1974
          %v1979 = vrsqrt.pop %v1968
          %v1980 = vmul.f32 %v1979, %v1968
          %v1981 = vmul.f32 %v1980, %v1979
          %v1982 = vmul.f32 0.5, %v1981
          %v1983 = vsub.f32 1.5, %v1982
          %v1984 = vmul.f32 %v1979, %v1983
          %vm1985 = vweird.f32 %v1968
          %vm1986 = vweird.f32 %v1979
          %vm1987 = vmor %vm1985, %vm1986
          %v1988 = vsel %vm1987, %v1979, %v1984
          %v1989 = vmul.f32 %v1955, %v1978
          %v1990 = vmul.f32 %v1956, %v1988
          %v1992 = vperm.slane %v1945, 0
          %v1994 = vmul.f32 %v1989, %v1992
          %v1995 = vmul.f32 %v1990, %v1992
          %v1997 = vperm.slane %v1946, 0
          %v1999 = vadd.f32 %v1994, %v1997
          %v2000 = vadd.f32 %v1995, %v1997
          %v2001 = vsel %vm1101, %v1999, 0.0
          %v2002 = vrot.slane %v2001, 4
          %v2003 = vadd.f32 %v2001, %v2002
          %v2004 = vrot.slane %v2003, 2
          %v2005 = vadd.f32 %v2003, %v2004
          %v2006 = vrot.slane %v2005, 1
          %v2007 = vadd.f32 %v2005, %v2006
          %v2008 = vsel %vm1101, %v2000, 0.0
          %v2009 = vrot.slane %v2008, 4
          %v2010 = vadd.f32 %v2008, %v2009
          %v2011 = vrot.slane %v2010, 2
          %v2012 = vadd.f32 %v2010, %v2011
          %v2013 = vrot.slane %v2012, 1
          %v2014 = vadd.f32 %v2012, %v2013
          %v2015 = vrcp.pop 8.0
          %v2016 = vmul.f32 8.0, %v2015
          %v2017 = vsub.f32 1.0, %v2016
          %v2018 = vmul.f32 %v2015, %v2017
          %v2019 = vadd.f32 %v2015, %v2018
          %vm2020 = vweird.f32 %v2015
          %v2021 = vsel %vm2020, %v2015, %v2019
          %v2022 = vmul.f32 %v2007, %v2021
          %v2023 = vmul.f32 %v2014, %v2021
          %v2024 = vpack.c.bf16 %v1944, %v1944
          %v2025 = vld [vmem:[%s18] sm:$0xf]
          %v2026 = vld [vmem:[%s18 + $0x4] sm:$0xf]
          %v2027 = vld [vmem:[%s18 + $0x8] sm:$0xf]
          %v2028 = vld [vmem:[%s18 + $0xc] sm:$0xf]
          %v2029 = vpack.c.bf16 %v2022, %v2022
          %v2030 = vpack.c.bf16 %v2023, %v2023
          %v2031 = vld [vmem:[%s19] sm:$0xf]
          %v2032 = vld [vmem:[%s19 + $0x4] sm:$0xf]
          %v2033 = vld [vmem:[%s19 + $0x8] sm:$0xf]
          %v2034 = vld [vmem:[%s19 + $0xc] sm:$0xf]
          %v2037 = vunpack.c.l.b16 %v2029
          %v2038 = vunpack.c.l.b16 %v2030
          %vm2039 = vcmask 1041409
          %v2040 = vsel %vm2039, %v2038, %v2037
          %v2041 = vpack.c.b16 %v2040, %v2040
          %v2046 = vunpack.c.l.b16 %v2031
          %v2047 = vunpack.c.l.b16 %v2032
          %v2048 = vunpack.c.l.b16 %v2033
          %v2049 = vunpack.c.l.b16 %v2034
          %v2050 = vpack.c.b16 %v2047, %v2046
          %v2051 = vpack.c.b16 %v2049, %v2048
          %v2055 = vsel %vm1101, %v2041, 0
          %2057 = vmatpush.bf16.msra.mxu0 0
          %2058 = vmatpush.bf16.msra.mxu0 0
          %2059 = vmatpush.bf16.msra.mxu0 0
          %2060 = vmatpush.bf16.msra.mxu0 0
          %2061 = vmatpush.bf16.msra.mxu0 0
          %2062 = vmatpush.bf16.msra.mxu0 0
          %2063 = vmatpush.bf16.msra.mxu0 %v2051
          %2064 = vmatpush.bf16.msra.mxu0 %v2050
          %2065 = vmatmul.bf16.gmra.mxu0 %v2055
          %v2066 = vpop.f32.mrf.mxu0
          %v2067 = vadd.f32 0.0, %v2066
          %v2068 = vpop.f32.mrf.mxu0
          %2069 = vdwg.mxu0
          %v2074 = vunpack.c.l.b16 %v2025
          %v2075 = vunpack.c.l.b16 %v2026
          %v2076 = vunpack.c.l.b16 %v2027
          %v2077 = vunpack.c.l.b16 %v2028
          %v2078 = vpack.c.b16 %v2075, %v2074
          %v2079 = vpack.c.b16 %v2077, %v2076
          %v2083 = vsel %vm1101, %v2024, 0
          %2085 = vmatpush.bf16.msra.mxu0 0
          %2086 = vmatpush.bf16.msra.mxu0 0
          %2087 = vmatpush.bf16.msra.mxu0 0
          %2088 = vmatpush.bf16.msra.mxu0 0
          %2089 = vmatpush.bf16.msra.mxu0 0
          %2090 = vmatpush.bf16.msra.mxu0 0
          %2091 = vmatpush.bf16.msra.mxu0 %v2079
          %2092 = vmatpush.bf16.msra.mxu0 %v2078
          %2093 = vmatmul.bf16.gmra.mxu0 %v2083
          %v2094 = vpop.f32.mrf.mxu0
          %v2095 = vadd.f32 %v2067, %v2094
          %v2096 = vpop.f32.mrf.mxu0
          %2097 = vdwg.mxu0
          %v2098 = vld [vmem:[%s20] sm:$0x1]
          %v2100 = vperm.slane %v2098, 0
          %v2102 = vadd.f32 %v2095, %v2100
          %v2103 = vmul.f32 %v2102, %v2102
          %v2104 = vmul.f32 %v2102, %v2103
          %v2105 = vmul.f32 %v2104, 0.044715
          %v2106 = vadd.f32 %v2102, %v2105
          %v2107 = vmul.f32 %v2106, 0.7978846
          %v2108 = vtanh.pop %v2107
          %v2109 = vadd.f32 %v2108, 1.0
          %v2110 = vmul.f32 %v2109, 0.5
          %v2111 = vmul.f32 %v2102, %v2110
          %v2112 = vpack.c.bf16 %v2111, %v2111
          %v2113 = vld [vmem:[%s21] sm:$0xf]
          %v2114 = vld [vmem:[%s21 + $0x4] sm:$0xf]
          %v2115 = vld [vmem:[%s21 + $0x8] sm:$0xf]
          %v2116 = vld [vmem:[%s21 + $0xc] sm:$0xf]
          %v2117 = vld [vmem:[%s22] sm:$0x1]
          %v2119 = vperm.slane %v2117, 0
          %v2125 = vunpack.c.l.b16 %v2113
          %v2126 = vunpack.c.l.b16 %v2114
          %v2127 = vunpack.c.l.b16 %v2115
          %v2128 = vunpack.c.l.b16 %v2116
          %v2129 = vpack.c.b16 %v2126, %v2125
          %v2130 = vpack.c.b16 %v2128, %v2127
          %v2134 = vsel %vm1101, %v2112, 0
          %2136 = vmatpush.bf16.msra.mxu0 0
          %2137 = vmatpush.bf16.msra.mxu0 0
          %2138 = vmatpush.bf16.msra.mxu0 0
          %2139 = vmatpush.bf16.msra.mxu0 0
          %2140 = vmatpush.bf16.msra.mxu0 0
          %2141 = vmatpush.bf16.msra.mxu0 0
          %2142 = vmatpush.bf16.msra.mxu0 %v2130
          %2143 = vmatpush.bf16.msra.mxu0 %v2129
          %2144 = vmatmul.bf16.gmra.mxu0 %v2134
          %v2145 = vpop.f32.mrf.mxu0
          %v2146 = vadd.f32 %v2119, %v2145
          %v2147 = vpop.f32.mrf.mxu0
          %2148 = vdwg.mxu0
          %v2149 = vmul.f32 %v2146, %v2146
          %v2150 = vmul.f32 %v2146, %v2149
          %v2151 = vmul.f32 %v2150, 0.044715
          %v2152 = vadd.f32 %v2146, %v2151
          %v2153 = vmul.f32 %v2152, 0.7978846
          %v2154 = vtanh.pop %v2153
          %v2155 = vadd.f32 %v2154, 1.0
          %v2156 = vmul.f32 %v2155, 0.5
          %v2157 = vmul.f32 %v2146, %v2156
          %v2158 = vpack.c.bf16 %v2157, %v2157
          %v2159 = vld [vmem:[%s23] sm:$0xf]
          %v2160 = vld [vmem:[%s23 + $0x4] sm:$0xf]
          %v2161 = vld [vmem:[%s24] sm:$0x1]
          %v2163 = vperm.slane %v2161, 0
          %v2167 = vunpack.c.l.b16 %v2159
          %v2168 = vunpack.c.l.b16 %v2160
          %v2169 = vpack.c.b16 %v2168, %v2167
          %v2172 = vsel %vm1599, %v2158, 0
          %2174 = vmatpush.bf16.msra.mxu0 0
          %2175 = vmatpush.bf16.msra.mxu0 0
          %2176 = vmatpush.bf16.msra.mxu0 0
          %2177 = vmatpush.bf16.msra.mxu0 0
          %2178 = vmatpush.bf16.msra.mxu0 0
          %2179 = vmatpush.bf16.msra.mxu0 0
          %2180 = vmatpush.bf16.msra.mxu0 0
          %2181 = vmatpush.bf16.msra.mxu0 %v2169
          %2182 = vmatmul.bf16.gmra.mxu0 %v2172
          %v2183 = vpop.f32.mrf.mxu0
          %v2184 = vadd.f32 %v2163, %v2183
          %v2185 = vpop.f32.mrf.mxu0
          %2186 = vdwg.mxu0
          %2187 = vst [vmem:[#allocation19] sm:$0x3] %v2184
        $region179: #{tpu_custom_call.1} parent=115 // pred_fallthru
          _
        // Predicated region
        $region180: #{tpu_custom_call.1} parent=115 // pred_check
          %p2188 = pneg %p625
        $region181: #{tpu_custom_call.1} parent=115 // pred_check_branch
          %2190 = sbr.rel (%p2188) target = $region183
        $region182: #{tpu_custom_call.1} parent=115 // pred_region
          %2192 = vsyncadd [#allocation6], 0
          %s2194 = sshll.u32 [#allocation19], 4
          %s2195 = int_to_ptr.vmem [resolvable:$true] %s2194
          %s2196 = sshll.u32 %s25, 4
          %s2197 = int_to_ptr.hbm [resolvable:$true] %s2196
          %2199 = dma.vmem_to_hbm [thread:$0]  %s2195, 32, %s2197, [#allocation6]
        $region183: #{tpu_custom_call.1} parent=115 // pred_fallthru
          _
        // Predicated region
        $region184: #{tpu_custom_call.1} parent=115 // pred_check
          %p2200 = pneg %p625
        $region185: #{tpu_custom_call.1} parent=115 // pred_check_branch
          %2202 = sbr.rel (%p2200) target = $region187
        $region186: #{tpu_custom_call.1} parent=115 // pred_region
          %2204 = dma.done [#allocation6], 32
        $region187: #{tpu_custom_call.1} parent=115 // pred_fallthru
          _
      $region116: #{tpu_custom_call.1} parent=5 // pred_fallthru
        _
      %p2205 = scmp.le.s32.totalorder 2, %s43
      // Predicated region
      $region188: #{tpu_custom_call.1} parent=5 // pred_check
        %p2206 = pneg %p2205
      $region189: #{tpu_custom_call.1} parent=5 // pred_check_branch
        %2208 = sbr.rel (%p2206) target = $region191
      $region190: #{tpu_custom_call.1} parent=5 // pred_region
        %s2209 = ssub.s32 %s43, 2
      $region191: #{tpu_custom_call.1} parent=5 // pred_fallthru
        _
    $region6: #{tpu_custom_call.1} parent=1 // loop_footer
      %s47 = sadd.s32 1, %s43
    $region7: #{tpu_custom_call.1} parent=1 // loop_footer_branch
      %42 = sbr.rel target = $region3
    $region8: #{tpu_custom_call.1} parent=1 // loop_exit
      _
    %2210 = vsyncpa [#allocation5], 1
    %s2211 = scalar_lea.sflag [#allocation5], 1
    %2212 = vsyncpa %s2211, 1
    %2213 = vsyncpa [#allocation8], 1
    %s2214 = scalar_lea.sflag [#allocation8], 1
    %2215 = vsyncpa %s2214, 1
    %2216 = vsyncpa [#allocation11], 1
    %s2217 = scalar_lea.sflag [#allocation11], 1
    %2218 = vsyncpa %s2217, 1
    %2219 = vsyncpa [#allocation14], 1
    %2220 = vsyncpa [#allocation17], 1
    %2221 = vsyncpa [#allocation6], 1
    %s2222 = scalar_lea.sflag [#allocation6], 1
    %2223 = vsyncpa %s2222, 1
  %2224 = vsyncmov [#allocation3]
  %s2225 = vpop.sfrf %2224
  %p2226 = scmp.eq.s32.totalorder %s2225, 0
  %p2227 = pneg %p2226
  %2229 = shalt.err (%p2227)

</llo_original>
